<compile_context>
chip_gen: v6e
topology: v6e:2x2x1
jax: 0.10.0
libtpu: 0.0.40
codegen_flags: <defaults>
</compile_context>

<pallas_src>
import jax
import jax.numpy as jnp
from jax.experimental import pallas as pl
from jax.experimental.pallas import tpu as pltpu

DH = 8                  # dim_head  (default 2**3)
DE = 32                 # dim_emb   (default 2**5)
DIM_IN = DH * DE        # 256
DIM_QKV = 3 * DH * DE   # 768
DIM_PROJ = 5 * DH * DE  # 1280 = [q | k | v | rot_half(q) | rot_half(k)]
HALF = DE // 2


def _pick_bz(dz, dk, target_rows=256):
    """Batch rows per grid step: fill the MXU M dim, keep >=2 grid steps."""
    if dk % 8 != 0:          # keep leading-dim reshapes layout-preserving
        return 1
    best = 1
    for cand in range(1, dz + 1):
        if dz % cand != 0:
            continue
        if cand * dk > 2 * target_rows:
            continue
        if dz // cand >= 2 or dz == 1:   # prefer >=2 steps (v7x megacore)
            best = cand
    return best


def _make_kernel(bz, dk, with_mask):
    M = bz * dk

    def kernel(*refs):
        if with_mask:
            x_ref, wt_ref, b_ref, c_ref, s_ref, m_ref, o_ref = refs
        else:
            x_ref, wt_ref, b_ref, c_ref, s_ref, o_ref = refs
            m_ref = None

        x = x_ref[...]                                      # (bz, dk, 256) f32
        xm = x.reshape(M, DIM_IN)

        # ---- input projection: bf16 operands, f32 accumulation on the MXU ----
        proj = jax.lax.dot_general(
            xm.astype(jnp.bfloat16), wt_ref[...],
            (((1,), (0,)), ((), ())),
            preferred_element_type=jnp.float32) + b_ref[...]  # (M, 1280) f32

        q = proj[:, 0:DIM_IN]
        k = proj[:, DIM_IN:2 * DIM_IN]
        v = proj[:, 2 * DIM_IN:3 * DIM_IN]
        qrot = proj[:, 3 * DIM_IN:4 * DIM_IN]   # rotate_half(q), folded into W
        krot = proj[:, 4 * DIM_IN:5 * DIM_IN]   # rotate_half(k), folded into W

        # ---- RoPE: two lane-dense f32 FMAs ----------------------------------
        cm = c_ref[...]                                     # (M, 256)
        sm = s_ref[...]
        qr3 = (q * cm + qrot * sm).reshape(bz, dk, DIM_IN)
        kr3 = (k * cm + krot * sm).reshape(bz, dk, DIM_IN)
        v3d = v.reshape(bz, dk, DIM_IN)

        if with_mask:
            mask = m_ref[...]                               # (bz, dk, dk)

        heads = []
        for h in range(DH):                                 # static, DH = 8
            sl = slice(h * DE, (h + 1) * DE)
            qh = qr3[:, :, sl].astype(jnp.bfloat16)         # (bz, dk, 32)
            kh = kr3[:, :, sl].astype(jnp.bfloat16)

            # inf_cube(v): cube, scale by 1/max|.| (clamped) -- all f32
            vc = v3d[:, :, sl]
            vc = vc * vc * vc
            vc = vc * pl.reciprocal(
                jnp.maximum(jnp.max(jnp.abs(vc), axis=-1, keepdims=True), 1e-38),
                approx=True)

            # scores, batched over z on the MXU: 'zqe,zke->zqk'
            sw = jax.lax.dot_general(
                qh, kh, (((2,), (2,)), ((0,), (0,))),
                preferred_element_type=jnp.float32)         # (bz, dk, dk) f32
            if with_mask:
                sw = jnp.where(mask > 0.0, 0.0, sw)

            # normed_square over the key axis (last axis here) -- f32
            w2 = sw * sw
            wn = w2 * pl.reciprocal(
                jnp.maximum(jnp.sum(w2, axis=-1, keepdims=True), 1e-38),
                approx=True)

            # out_h = wn @ v^3, batched over z on the MXU: 'zqk,zke->zqe'
            oh = jax.lax.dot_general(
                wn.astype(jnp.bfloat16), vc.astype(jnp.bfloat16),
                (((2,), (1,)), ((0,), (0,))),
                preferred_element_type=jnp.float32)         # (bz, dk, 32) f32
            heads.append(oh)

        # single lane-dense residual store
        o_ref[...] = (x + jnp.concatenate(heads, axis=-1)).astype(o_ref.dtype)

    return kernel


def res_encoder_base(x, wt, b, cos, sin, mask=None):
    """x: (dz, dk, 256) f32; wt: (256, 768) = W^T; b: (768,);
       cos/sin: (dk, 16) RoPE tables; mask: optional (dz, dk) {0,1}."""
    dz, dk, dim_in = x.shape
    assert dim_in == DIM_IN

    bz = _pick_bz(dz, dk)
    grid = (dz // bz,)
    M = bz * dk

    # rotate_half as a signed output-column permutation, folded into W / b
    idx = jnp.arange(DIM_IN)
    within = idx % DE
    src = jnp.where(within < HALF, idx + HALF, idx - HALF)
    sign = jnp.where(within < HALF, -1.0, 1.0).astype(jnp.float32)

    wq, wk, wv = wt[:, :DIM_IN], wt[:, DIM_IN:2 * DIM_IN], wt[:, 2 * DIM_IN:]
    bq, bk, bv = b[:DIM_IN], b[DIM_IN:2 * DIM_IN], b[2 * DIM_IN:]
    wt_ext = jnp.concatenate(
        [wq, wk, wv, wq[:, src] * sign[None, :], wk[:, src] * sign[None, :]],
        axis=1).astype(jnp.bfloat16)                        # (256, 1280) bf16
    b_ext = jnp.concatenate(
        [bq, bk, bv, bq[src] * sign, bk[src] * sign]
    ).reshape(1, DIM_PROJ).astype(jnp.float32)              # (1, 1280) f32

    # full-width RoPE tables: tiled across heads and across the bz rows/block
    cfull = jnp.tile(jnp.concatenate([cos, cos], axis=-1), (bz, DH)).astype(jnp.float32)
    sfull = jnp.tile(jnp.concatenate([sin, sin], axis=-1), (bz, DH)).astype(jnp.float32)

    kernel = _make_kernel(bz, dk, mask is not None)
    in_specs = [
        pl.BlockSpec((bz, dk, DIM_IN), lambda z: (z, 0, 0)),     # x (aliased to out)
        pl.BlockSpec((DIM_IN, DIM_PROJ), lambda z: (0, 0)),      # extended W^T (resident)
        pl.BlockSpec((1, DIM_PROJ), lambda z: (0, 0)),           # extended bias
        pl.BlockSpec((M, DIM_IN), lambda z: (0, 0)),             # cos, full width
        pl.BlockSpec((M, DIM_IN), lambda z: (0, 0)),             # sin, full width
    ]
    args = [x, wt_ext, b_ext, cfull, sfull]
    if mask is not None:
        mf = mask.astype(jnp.float32)
        mask_qk = jnp.maximum(mf[:, :, None], mf[:, None, :])   # (dz, dk, dk)
        in_specs.append(pl.BlockSpec((bz, dk, dk), lambda z: (z, 0, 0)))
        args.append(mask_qk)

    return pl.pallas_call(
        kernel,
        out_shape=jax.ShapeDtypeStruct((dz, dk, DIM_IN), x.dtype),
        grid=grid,
        in_specs=in_specs,
        out_specs=pl.BlockSpec((bz, dk, DIM_IN), lambda z: (z, 0, 0)),
        input_output_aliases={0: 0},        # residual written back into x's buffer
        compiler_params=pltpu.CompilerParams(
            dimension_semantics=("parallel",)),
    )(*args)


def _reference(x, wt, b, cos, sin, mask=None):
    """Pure-JAX (f32, HIGHEST precision) replica of ResEncoderBase.forward."""
    dz, dk, _ = x.shape
    hp = jax.lax.Precision.HIGHEST
    qkv = (jnp.einsum('zki,io->zko', x, wt, precision=hp) + b
           ).reshape(dz, dk, 3, DH, DE)
    q, k, v = qkv[:, :, 0], qkv[:, :, 1], qkv[:, :, 2]

    def rope(t):
        t1, t2 = t[..., :HALF], t[..., HALF:]
        c = cos[None, :, None, :]
        s = sin[None, :, None, :]
        return jnp.concatenate([t1 * c - t2 * s, t1 * s + t2 * c], axis=-1)

    q, k = rope(q), rope(k)
    v3 = v ** 3
    v3 = v3 / jnp.maximum(jnp.max(jnp.abs(v3), axis=-1, keepdims=True), 1e-38)
    w = jnp.einsum('zqhe,zkhe->zqkh', q, k, precision=hp)
    if mask is not None:
        m = jnp.logical_or(mask[:, :, None, None] > 0, mask[:, None, :, None] > 0)
        w = jnp.where(m, 0.0, w)
    w2 = w ** 2
    wn = w2 / jnp.maximum(jnp.sum(w2, axis=-2, keepdims=True), 1e-38)
    o = jnp.einsum('zqkh,zkhe->zqhe', wn, v3, precision=hp).reshape(dz, dk, DH * DE)
    return x + o


if __name__ == "__main__":
    dz, dk = 2, 8
    key = jax.random.PRNGKey(0)
    kx, kw, kb = jax.random.split(key, 3)

    x = jax.random.normal(kx, (dz, dk, DIM_IN), jnp.float32)
    bound = 1.0 / (DIM_IN ** 0.5)
    w_torch = jax.random.uniform(kw, (DIM_QKV, DIM_IN), jnp.float32, -bound, bound)
    b = jax.random.uniform(kb, (DIM_QKV,), jnp.float32, -bound, bound)
    wt = w_torch.T                                  # (dim_in, 3*dh*de)

    pos = jnp.arange(dk, dtype=jnp.float32)
    inv_freq = 1.0 / (10000.0 ** (jnp.arange(HALF, dtype=jnp.float32) / HALF))
    ang = pos[:, None] * inv_freq[None, :]
    cos, sin = jnp.cos(ang), jnp.sin(ang)

    # Reference first: x's buffer is donated/aliased to the kernel output below.
    ref = _reference(x, wt, b, cos, sin, mask=None)
    ref = jax.block_until_ready(ref)

    out = res_encoder_base(x, wt, b, cos, sin, mask=None)
    out = jax.block_until_ready(out)

    assert out.shape == (dz, dk, DIM_IN)
    # bf16 MXU operands + approx reciprocal vs f32 HIGHEST reference -> ~1% level
    err = jnp.max(jnp.abs(out - ref))
    assert jnp.allclose(out, ref, rtol=2e-2, atol=2e-2), f"max diff {err}"
    print("KERNEL_OK")
</pallas_src>

<mosaic_0001>
module attributes {stable_mosaic.version = 11 : i64} {
  func.func @kernel(%arg0: i32, %arg1: memref<1x8x256xf32, #tpu.memory_space<vmem>>, %arg2: memref<256x1280xbf16, #tpu.memory_space<vmem>>, %arg3: memref<1x1280xf32, #tpu.memory_space<vmem>>, %arg4: memref<8x256xf32, #tpu.memory_space<vmem>>, %arg5: memref<8x256xf32, #tpu.memory_space<vmem>>, %arg6: memref<1x8x256xf32, #tpu.memory_space<vmem>>) attributes {dimension_semantics = [#tpu.dimension_semantics<parallel>], iteration_bounds = array<i64: 2>, scalar_prefetch = 0 : i64, scratch_operands = 0 : i64, tpu.core_type = #tpu.core_type<tc>, window_params = [{transform_indices = @transform_0, window_bounds = array<i64: 1, 8, 256>}, {pipeline_mode = #tpu.pipeline_mode<synchronous>, transform_indices = @transform_1, window_bounds = array<i64: 256, 1280>}, {pipeline_mode = #tpu.pipeline_mode<synchronous>, transform_indices = @transform_2, window_bounds = array<i64: 1, 1280>}, {pipeline_mode = #tpu.pipeline_mode<synchronous>, transform_indices = @transform_3, window_bounds = array<i64: 8, 256>}, {pipeline_mode = #tpu.pipeline_mode<synchronous>, transform_indices = @transform_4, window_bounds = array<i64: 8, 256>}, {transform_indices = @transform_5, window_bounds = array<i64: 1, 8, 256>}]} {
    %c0 = arith.constant 0 : index
    %c0_0 = arith.constant 0 : index
    %c0_1 = arith.constant 0 : index
    %0 = vector.load %arg1[%c0, %c0_0, %c0_1] : memref<1x8x256xf32, #tpu.memory_space<vmem>>, vector<1x8x256xf32>
    %1 = vector.shape_cast %0 : vector<1x8x256xf32> to vector<8x256xf32>
    %2 = arith.truncf %1 : vector<8x256xf32> to vector<8x256xbf16>
    %c0_2 = arith.constant 0 : index
    %c0_3 = arith.constant 0 : index
    %3 = vector.load %arg2[%c0_2, %c0_3] : memref<256x1280xbf16, #tpu.memory_space<vmem>>, vector<256x1280xbf16>
    %cst = arith.constant dense<0.000000e+00> : vector<8x1280xf32>
    %4 = tpu.matmul %2, %3, %cst {dimension_numbers = #tpu.dot_dimension_numbers<[1], [0], [0], [1], [0, 0, 1, 1], [], []>} : vector<8x256xbf16>, vector<256x1280xbf16>, vector<8x1280xf32> -> vector<8x1280xf32>
    %c0_4 = arith.constant 0 : index
    %c0_5 = arith.constant 0 : index
    %5 = vector.load %arg3[%c0_4, %c0_5] : memref<1x1280xf32, #tpu.memory_space<vmem>>, vector<1x1280xf32>
    %6 = vector.broadcast %5 : vector<1x1280xf32> to vector<8x1280xf32>
    %7 = arith.addf %4, %6 : vector<8x1280xf32>
    %8 = vector.extract_strided_slice %7 {offsets = [0, 0], sizes = [8, 256], strides = [1, 1]} : vector<8x1280xf32> to vector<8x256xf32>
    %9 = vector.extract_strided_slice %7 {offsets = [0, 256], sizes = [8, 256], strides = [1, 1]} : vector<8x1280xf32> to vector<8x256xf32>
    %10 = vector.extract_strided_slice %7 {offsets = [0, 512], sizes = [8, 256], strides = [1, 1]} : vector<8x1280xf32> to vector<8x256xf32>
    %11 = vector.extract_strided_slice %7 {offsets = [0, 768], sizes = [8, 256], strides = [1, 1]} : vector<8x1280xf32> to vector<8x256xf32>
    %12 = vector.extract_strided_slice %7 {offsets = [0, 1024], sizes = [8, 256], strides = [1, 1]} : vector<8x1280xf32> to vector<8x256xf32>
    %c0_6 = arith.constant 0 : index
    %c0_7 = arith.constant 0 : index
    %13 = vector.load %arg4[%c0_6, %c0_7] : memref<8x256xf32, #tpu.memory_space<vmem>>, vector<8x256xf32>
    %c0_8 = arith.constant 0 : index
    %c0_9 = arith.constant 0 : index
    %14 = vector.load %arg5[%c0_8, %c0_9] : memref<8x256xf32, #tpu.memory_space<vmem>>, vector<8x256xf32>
    %15 = arith.mulf %8, %13 : vector<8x256xf32>
    %16 = arith.mulf %11, %14 : vector<8x256xf32>
    %17 = arith.addf %15, %16 : vector<8x256xf32>
    %18 = vector.shape_cast %17 : vector<8x256xf32> to vector<1x8x256xf32>
    %19 = arith.mulf %9, %13 : vector<8x256xf32>
    %20 = arith.mulf %12, %14 : vector<8x256xf32>
    %21 = arith.addf %19, %20 : vector<8x256xf32>
    %22 = vector.shape_cast %21 : vector<8x256xf32> to vector<1x8x256xf32>
    %23 = vector.shape_cast %10 : vector<8x256xf32> to vector<1x8x256xf32>
    %24 = vector.extract_strided_slice %18 {offsets = [0, 0, 0], sizes = [1, 8, 32], strides = [1, 1, 1]} : vector<1x8x256xf32> to vector<1x8x32xf32>
    %25 = arith.truncf %24 : vector<1x8x32xf32> to vector<1x8x32xbf16>
    %26 = vector.extract_strided_slice %22 {offsets = [0, 0, 0], sizes = [1, 8, 32], strides = [1, 1, 1]} : vector<1x8x256xf32> to vector<1x8x32xf32>
    %27 = arith.truncf %26 : vector<1x8x32xf32> to vector<1x8x32xbf16>
    %28 = vector.extract_strided_slice %23 {offsets = [0, 0, 0], sizes = [1, 8, 32], strides = [1, 1, 1]} : vector<1x8x256xf32> to vector<1x8x32xf32>
    %29 = arith.mulf %28, %28 : vector<1x8x32xf32>
    %30 = arith.mulf %29, %28 : vector<1x8x32xf32>
    %31 = math.absf %30 : vector<1x8x32xf32>
    %cst_10 = arith.constant dense<0xFF800000> : vector<1x8xf32>
    %32 = vector.multi_reduction <maximumf>, %31, %cst_10 [2] : vector<1x8x32xf32> to vector<1x8xf32>
    %33 = vector.shape_cast %32 : vector<1x8xf32> to vector<1x8x1xf32>
    %cst_11 = arith.constant 9.99999935E-39 : f32
    %34 = vector.broadcast %cst_11 : f32 to vector<1x8x1xf32>
    %35 = arith.maximumf %33, %34 : vector<1x8x1xf32>
    %36 = tpu.reciprocal %35 {approx = true} : vector<1x8x1xf32> -> vector<1x8x1xf32>
    %37 = vector.broadcast %36 : vector<1x8x1xf32> to vector<1x8x32xf32>
    %38 = arith.mulf %30, %37 : vector<1x8x32xf32>
    %cst_12 = arith.constant dense<0.000000e+00> : vector<1x8x8xf32>
    %39 = tpu.matmul %25, %27, %cst_12 {dimension_numbers = #tpu.dot_dimension_numbers<[2], [2], [1], [1], [0, 0, 0, 1, 1, 1], [0], [0]>} : vector<1x8x32xbf16>, vector<1x8x32xbf16>, vector<1x8x8xf32> -> vector<1x8x8xf32>
    %40 = arith.mulf %39, %39 : vector<1x8x8xf32>
    %cst_13 = arith.constant dense<0.000000e+00> : vector<1x8xf32>
    %41 = vector.multi_reduction <add>, %40, %cst_13 [2] : vector<1x8x8xf32> to vector<1x8xf32>
    %42 = vector.shape_cast %41 : vector<1x8xf32> to vector<1x8x1xf32>
    %cst_14 = arith.constant 9.99999935E-39 : f32
    %43 = vector.broadcast %cst_14 : f32 to vector<1x8x1xf32>
    %44 = arith.maximumf %42, %43 : vector<1x8x1xf32>
    %45 = tpu.reciprocal %44 {approx = true} : vector<1x8x1xf32> -> vector<1x8x1xf32>
    %46 = vector.broadcast %45 : vector<1x8x1xf32> to vector<1x8x8xf32>
    %47 = arith.mulf %40, %46 : vector<1x8x8xf32>
    %48 = arith.truncf %47 : vector<1x8x8xf32> to vector<1x8x8xbf16>
    %49 = arith.truncf %38 : vector<1x8x32xf32> to vector<1x8x32xbf16>
    %cst_15 = arith.constant dense<0.000000e+00> : vector<1x8x32xf32>
    %50 = tpu.matmul %48, %49, %cst_15 {dimension_numbers = #tpu.dot_dimension_numbers<[2], [1], [1], [2], [0, 0, 0, 1, 1, 2], [0], [0]>} : vector<1x8x8xbf16>, vector<1x8x32xbf16>, vector<1x8x32xf32> -> vector<1x8x32xf32>
    %51 = vector.extract_strided_slice %18 {offsets = [0, 0, 32], sizes = [1, 8, 32], strides = [1, 1, 1]} : vector<1x8x256xf32> to vector<1x8x32xf32>
    %52 = arith.truncf %51 : vector<1x8x32xf32> to vector<1x8x32xbf16>
    %53 = vector.extract_strided_slice %22 {offsets = [0, 0, 32], sizes = [1, 8, 32], strides = [1, 1, 1]} : vector<1x8x256xf32> to vector<1x8x32xf32>
    %54 = arith.truncf %53 : vector<1x8x32xf32> to vector<1x8x32xbf16>
    %55 = vector.extract_strided_slice %23 {offsets = [0, 0, 32], sizes = [1, 8, 32], strides = [1, 1, 1]} : vector<1x8x256xf32> to vector<1x8x32xf32>
    %56 = arith.mulf %55, %55 : vector<1x8x32xf32>
    %57 = arith.mulf %56, %55 : vector<1x8x32xf32>
    %58 = math.absf %57 : vector<1x8x32xf32>
    %cst_16 = arith.constant dense<0xFF800000> : vector<1x8xf32>
    %59 = vector.multi_reduction <maximumf>, %58, %cst_16 [2] : vector<1x8x32xf32> to vector<1x8xf32>
    %60 = vector.shape_cast %59 : vector<1x8xf32> to vector<1x8x1xf32>
    %cst_17 = arith.constant 9.99999935E-39 : f32
    %61 = vector.broadcast %cst_17 : f32 to vector<1x8x1xf32>
    %62 = arith.maximumf %60, %61 : vector<1x8x1xf32>
    %63 = tpu.reciprocal %62 {approx = true} : vector<1x8x1xf32> -> vector<1x8x1xf32>
    %64 = vector.broadcast %63 : vector<1x8x1xf32> to vector<1x8x32xf32>
    %65 = arith.mulf %57, %64 : vector<1x8x32xf32>
    %cst_18 = arith.constant dense<0.000000e+00> : vector<1x8x8xf32>
    %66 = tpu.matmul %52, %54, %cst_18 {dimension_numbers = #tpu.dot_dimension_numbers<[2], [2], [1], [1], [0, 0, 0, 1, 1, 1], [0], [0]>} : vector<1x8x32xbf16>, vector<1x8x32xbf16>, vector<1x8x8xf32> -> vector<1x8x8xf32>
    %67 = arith.mulf %66, %66 : vector<1x8x8xf32>
    %cst_19 = arith.constant dense<0.000000e+00> : vector<1x8xf32>
    %68 = vector.multi_reduction <add>, %67, %cst_19 [2] : vector<1x8x8xf32> to vector<1x8xf32>
    %69 = vector.shape_cast %68 : vector<1x8xf32> to vector<1x8x1xf32>
    %cst_20 = arith.constant 9.99999935E-39 : f32
    %70 = vector.broadcast %cst_20 : f32 to vector<1x8x1xf32>
    %71 = arith.maximumf %69, %70 : vector<1x8x1xf32>
    %72 = tpu.reciprocal %71 {approx = true} : vector<1x8x1xf32> -> vector<1x8x1xf32>
    %73 = vector.broadcast %72 : vector<1x8x1xf32> to vector<1x8x8xf32>
    %74 = arith.mulf %67, %73 : vector<1x8x8xf32>
    %75 = arith.truncf %74 : vector<1x8x8xf32> to vector<1x8x8xbf16>
    %76 = arith.truncf %65 : vector<1x8x32xf32> to vector<1x8x32xbf16>
    %cst_21 = arith.constant dense<0.000000e+00> : vector<1x8x32xf32>
    %77 = tpu.matmul %75, %76, %cst_21 {dimension_numbers = #tpu.dot_dimension_numbers<[2], [1], [1], [2], [0, 0, 0, 1, 1, 2], [0], [0]>} : vector<1x8x8xbf16>, vector<1x8x32xbf16>, vector<1x8x32xf32> -> vector<1x8x32xf32>
    %78 = vector.extract_strided_slice %18 {offsets = [0, 0, 64], sizes = [1, 8, 32], strides = [1, 1, 1]} : vector<1x8x256xf32> to vector<1x8x32xf32>
    %79 = arith.truncf %78 : vector<1x8x32xf32> to vector<1x8x32xbf16>
    %80 = vector.extract_strided_slice %22 {offsets = [0, 0, 64], sizes = [1, 8, 32], strides = [1, 1, 1]} : vector<1x8x256xf32> to vector<1x8x32xf32>
    %81 = arith.truncf %80 : vector<1x8x32xf32> to vector<1x8x32xbf16>
    %82 = vector.extract_strided_slice %23 {offsets = [0, 0, 64], sizes = [1, 8, 32], strides = [1, 1, 1]} : vector<1x8x256xf32> to vector<1x8x32xf32>
    %83 = arith.mulf %82, %82 : vector<1x8x32xf32>
    %84 = arith.mulf %83, %82 : vector<1x8x32xf32>
    %85 = math.absf %84 : vector<1x8x32xf32>
    %cst_22 = arith.constant dense<0xFF800000> : vector<1x8xf32>
    %86 = vector.multi_reduction <maximumf>, %85, %cst_22 [2] : vector<1x8x32xf32> to vector<1x8xf32>
    %87 = vector.shape_cast %86 : vector<1x8xf32> to vector<1x8x1xf32>
    %cst_23 = arith.constant 9.99999935E-39 : f32
    %88 = vector.broadcast %cst_23 : f32 to vector<1x8x1xf32>
    %89 = arith.maximumf %87, %88 : vector<1x8x1xf32>
    %90 = tpu.reciprocal %89 {approx = true} : vector<1x8x1xf32> -> vector<1x8x1xf32>
    %91 = vector.broadcast %90 : vector<1x8x1xf32> to vector<1x8x32xf32>
    %92 = arith.mulf %84, %91 : vector<1x8x32xf32>
    %cst_24 = arith.constant dense<0.000000e+00> : vector<1x8x8xf32>
    %93 = tpu.matmul %79, %81, %cst_24 {dimension_numbers = #tpu.dot_dimension_numbers<[2], [2], [1], [1], [0, 0, 0, 1, 1, 1], [0], [0]>} : vector<1x8x32xbf16>, vector<1x8x32xbf16>, vector<1x8x8xf32> -> vector<1x8x8xf32>
    %94 = arith.mulf %93, %93 : vector<1x8x8xf32>
    %cst_25 = arith.constant dense<0.000000e+00> : vector<1x8xf32>
    %95 = vector.multi_reduction <add>, %94, %cst_25 [2] : vector<1x8x8xf32> to vector<1x8xf32>
    %96 = vector.shape_cast %95 : vector<1x8xf32> to vector<1x8x1xf32>
    %cst_26 = arith.constant 9.99999935E-39 : f32
    %97 = vector.broadcast %cst_26 : f32 to vector<1x8x1xf32>
    %98 = arith.maximumf %96, %97 : vector<1x8x1xf32>
    %99 = tpu.reciprocal %98 {approx = true} : vector<1x8x1xf32> -> vector<1x8x1xf32>
    %100 = vector.broadcast %99 : vector<1x8x1xf32> to vector<1x8x8xf32>
    %101 = arith.mulf %94, %100 : vector<1x8x8xf32>
    %102 = arith.truncf %101 : vector<1x8x8xf32> to vector<1x8x8xbf16>
    %103 = arith.truncf %92 : vector<1x8x32xf32> to vector<1x8x32xbf16>
    %cst_27 = arith.constant dense<0.000000e+00> : vector<1x8x32xf32>
    %104 = tpu.matmul %102, %103, %cst_27 {dimension_numbers = #tpu.dot_dimension_numbers<[2], [1], [1], [2], [0, 0, 0, 1, 1, 2], [0], [0]>} : vector<1x8x8xbf16>, vector<1x8x32xbf16>, vector<1x8x32xf32> -> vector<1x8x32xf32>
    %105 = vector.extract_strided_slice %18 {offsets = [0, 0, 96], sizes = [1, 8, 32], strides = [1, 1, 1]} : vector<1x8x256xf32> to vector<1x8x32xf32>
    %106 = arith.truncf %105 : vector<1x8x32xf32> to vector<1x8x32xbf16>
    %107 = vector.extract_strided_slice %22 {offsets = [0, 0, 96], sizes = [1, 8, 32], strides = [1, 1, 1]} : vector<1x8x256xf32> to vector<1x8x32xf32>
    %108 = arith.truncf %107 : vector<1x8x32xf32> to vector<1x8x32xbf16>
    %109 = vector.extract_strided_slice %23 {offsets = [0, 0, 96], sizes = [1, 8, 32], strides = [1, 1, 1]} : vector<1x8x256xf32> to vector<1x8x32xf32>
    %110 = arith.mulf %109, %109 : vector<1x8x32xf32>
    %111 = arith.mulf %110, %109 : vector<1x8x32xf32>
    %112 = math.absf %111 : vector<1x8x32xf32>
    %cst_28 = arith.constant dense<0xFF800000> : vector<1x8xf32>
    %113 = vector.multi_reduction <maximumf>, %112, %cst_28 [2] : vector<1x8x32xf32> to vector<1x8xf32>
    %114 = vector.shape_cast %113 : vector<1x8xf32> to vector<1x8x1xf32>
    %cst_29 = arith.constant 9.99999935E-39 : f32
    %115 = vector.broadcast %cst_29 : f32 to vector<1x8x1xf32>
    %116 = arith.maximumf %114, %115 : vector<1x8x1xf32>
    %117 = tpu.reciprocal %116 {approx = true} : vector<1x8x1xf32> -> vector<1x8x1xf32>
    %118 = vector.broadcast %117 : vector<1x8x1xf32> to vector<1x8x32xf32>
    %119 = arith.mulf %111, %118 : vector<1x8x32xf32>
    %cst_30 = arith.constant dense<0.000000e+00> : vector<1x8x8xf32>
    %120 = tpu.matmul %106, %108, %cst_30 {dimension_numbers = #tpu.dot_dimension_numbers<[2], [2], [1], [1], [0, 0, 0, 1, 1, 1], [0], [0]>} : vector<1x8x32xbf16>, vector<1x8x32xbf16>, vector<1x8x8xf32> -> vector<1x8x8xf32>
    %121 = arith.mulf %120, %120 : vector<1x8x8xf32>
    %cst_31 = arith.constant dense<0.000000e+00> : vector<1x8xf32>
    %122 = vector.multi_reduction <add>, %121, %cst_31 [2] : vector<1x8x8xf32> to vector<1x8xf32>
    %123 = vector.shape_cast %122 : vector<1x8xf32> to vector<1x8x1xf32>
    %cst_32 = arith.constant 9.99999935E-39 : f32
    %124 = vector.broadcast %cst_32 : f32 to vector<1x8x1xf32>
    %125 = arith.maximumf %123, %124 : vector<1x8x1xf32>
    %126 = tpu.reciprocal %125 {approx = true} : vector<1x8x1xf32> -> vector<1x8x1xf32>
    %127 = vector.broadcast %126 : vector<1x8x1xf32> to vector<1x8x8xf32>
    %128 = arith.mulf %121, %127 : vector<1x8x8xf32>
    %129 = arith.truncf %128 : vector<1x8x8xf32> to vector<1x8x8xbf16>
    %130 = arith.truncf %119 : vector<1x8x32xf32> to vector<1x8x32xbf16>
    %cst_33 = arith.constant dense<0.000000e+00> : vector<1x8x32xf32>
    %131 = tpu.matmul %129, %130, %cst_33 {dimension_numbers = #tpu.dot_dimension_numbers<[2], [1], [1], [2], [0, 0, 0, 1, 1, 2], [0], [0]>} : vector<1x8x8xbf16>, vector<1x8x32xbf16>, vector<1x8x32xf32> -> vector<1x8x32xf32>
    %132 = vector.extract_strided_slice %18 {offsets = [0, 0, 128], sizes = [1, 8, 32], strides = [1, 1, 1]} : vector<1x8x256xf32> to vector<1x8x32xf32>
    %133 = arith.truncf %132 : vector<1x8x32xf32> to vector<1x8x32xbf16>
    %134 = vector.extract_strided_slice %22 {offsets = [0, 0, 128], sizes = [1, 8, 32], strides = [1, 1, 1]} : vector<1x8x256xf32> to vector<1x8x32xf32>
    %135 = arith.truncf %134 : vector<1x8x32xf32> to vector<1x8x32xbf16>
    %136 = vector.extract_strided_slice %23 {offsets = [0, 0, 128], sizes = [1, 8, 32], strides = [1, 1, 1]} : vector<1x8x256xf32> to vector<1x8x32xf32>
    %137 = arith.mulf %136, %136 : vector<1x8x32xf32>
    %138 = arith.mulf %137, %136 : vector<1x8x32xf32>
    %139 = math.absf %138 : vector<1x8x32xf32>
    %cst_34 = arith.constant dense<0xFF800000> : vector<1x8xf32>
    %140 = vector.multi_reduction <maximumf>, %139, %cst_34 [2] : vector<1x8x32xf32> to vector<1x8xf32>
    %141 = vector.shape_cast %140 : vector<1x8xf32> to vector<1x8x1xf32>
    %cst_35 = arith.constant 9.99999935E-39 : f32
    %142 = vector.broadcast %cst_35 : f32 to vector<1x8x1xf32>
    %143 = arith.maximumf %141, %142 : vector<1x8x1xf32>
    %144 = tpu.reciprocal %143 {approx = true} : vector<1x8x1xf32> -> vector<1x8x1xf32>
    %145 = vector.broadcast %144 : vector<1x8x1xf32> to vector<1x8x32xf32>
    %146 = arith.mulf %138, %145 : vector<1x8x32xf32>
    %cst_36 = arith.constant dense<0.000000e+00> : vector<1x8x8xf32>
    %147 = tpu.matmul %133, %135, %cst_36 {dimension_numbers = #tpu.dot_dimension_numbers<[2], [2], [1], [1], [0, 0, 0, 1, 1, 1], [0], [0]>} : vector<1x8x32xbf16>, vector<1x8x32xbf16>, vector<1x8x8xf32> -> vector<1x8x8xf32>
    %148 = arith.mulf %147, %147 : vector<1x8x8xf32>
    %cst_37 = arith.constant dense<0.000000e+00> : vector<1x8xf32>
    %149 = vector.multi_reduction <add>, %148, %cst_37 [2] : vector<1x8x8xf32> to vector<1x8xf32>
    %150 = vector.shape_cast %149 : vector<1x8xf32> to vector<1x8x1xf32>
    %cst_38 = arith.constant 9.99999935E-39 : f32
    %151 = vector.broadcast %cst_38 : f32 to vector<1x8x1xf32>
    %152 = arith.maximumf %150, %151 : vector<1x8x1xf32>
    %153 = tpu.reciprocal %152 {approx = true} : vector<1x8x1xf32> -> vector<1x8x1xf32>
    %154 = vector.broadcast %153 : vector<1x8x1xf32> to vector<1x8x8xf32>
    %155 = arith.mulf %148, %154 : vector<1x8x8xf32>
    %156 = arith.truncf %155 : vector<1x8x8xf32> to vector<1x8x8xbf16>
    %157 = arith.truncf %146 : vector<1x8x32xf32> to vector<1x8x32xbf16>
    %cst_39 = arith.constant dense<0.000000e+00> : vector<1x8x32xf32>
    %158 = tpu.matmul %156, %157, %cst_39 {dimension_numbers = #tpu.dot_dimension_numbers<[2], [1], [1], [2], [0, 0, 0, 1, 1, 2], [0], [0]>} : vector<1x8x8xbf16>, vector<1x8x32xbf16>, vector<1x8x32xf32> -> vector<1x8x32xf32>
    %159 = vector.extract_strided_slice %18 {offsets = [0, 0, 160], sizes = [1, 8, 32], strides = [1, 1, 1]} : vector<1x8x256xf32> to vector<1x8x32xf32>
    %160 = arith.truncf %159 : vector<1x8x32xf32> to vector<1x8x32xbf16>
    %161 = vector.extract_strided_slice %22 {offsets = [0, 0, 160], sizes = [1, 8, 32], strides = [1, 1, 1]} : vector<1x8x256xf32> to vector<1x8x32xf32>
    %162 = arith.truncf %161 : vector<1x8x32xf32> to vector<1x8x32xbf16>
    %163 = vector.extract_strided_slice %23 {offsets = [0, 0, 160], sizes = [1, 8, 32], strides = [1, 1, 1]} : vector<1x8x256xf32> to vector<1x8x32xf32>
    %164 = arith.mulf %163, %163 : vector<1x8x32xf32>
    %165 = arith.mulf %164, %163 : vector<1x8x32xf32>
    %166 = math.absf %165 : vector<1x8x32xf32>
    %cst_40 = arith.constant dense<0xFF800000> : vector<1x8xf32>
    %167 = vector.multi_reduction <maximumf>, %166, %cst_40 [2] : vector<1x8x32xf32> to vector<1x8xf32>
    %168 = vector.shape_cast %167 : vector<1x8xf32> to vector<1x8x1xf32>
    %cst_41 = arith.constant 9.99999935E-39 : f32
    %169 = vector.broadcast %cst_41 : f32 to vector<1x8x1xf32>
    %170 = arith.maximumf %168, %169 : vector<1x8x1xf32>
    %171 = tpu.reciprocal %170 {approx = true} : vector<1x8x1xf32> -> vector<1x8x1xf32>
    %172 = vector.broadcast %171 : vector<1x8x1xf32> to vector<1x8x32xf32>
    %173 = arith.mulf %165, %172 : vector<1x8x32xf32>
    %cst_42 = arith.constant dense<0.000000e+00> : vector<1x8x8xf32>
    %174 = tpu.matmul %160, %162, %cst_42 {dimension_numbers = #tpu.dot_dimension_numbers<[2], [2], [1], [1], [0, 0, 0, 1, 1, 1], [0], [0]>} : vector<1x8x32xbf16>, vector<1x8x32xbf16>, vector<1x8x8xf32> -> vector<1x8x8xf32>
    %175 = arith.mulf %174, %174 : vector<1x8x8xf32>
    %cst_43 = arith.constant dense<0.000000e+00> : vector<1x8xf32>
    %176 = vector.multi_reduction <add>, %175, %cst_43 [2] : vector<1x8x8xf32> to vector<1x8xf32>
    %177 = vector.shape_cast %176 : vector<1x8xf32> to vector<1x8x1xf32>
    %cst_44 = arith.constant 9.99999935E-39 : f32
    %178 = vector.broadcast %cst_44 : f32 to vector<1x8x1xf32>
    %179 = arith.maximumf %177, %178 : vector<1x8x1xf32>
    %180 = tpu.reciprocal %179 {approx = true} : vector<1x8x1xf32> -> vector<1x8x1xf32>
    %181 = vector.broadcast %180 : vector<1x8x1xf32> to vector<1x8x8xf32>
    %182 = arith.mulf %175, %181 : vector<1x8x8xf32>
    %183 = arith.truncf %182 : vector<1x8x8xf32> to vector<1x8x8xbf16>
    %184 = arith.truncf %173 : vector<1x8x32xf32> to vector<1x8x32xbf16>
    %cst_45 = arith.constant dense<0.000000e+00> : vector<1x8x32xf32>
    %185 = tpu.matmul %183, %184, %cst_45 {dimension_numbers = #tpu.dot_dimension_numbers<[2], [1], [1], [2], [0, 0, 0, 1, 1, 2], [0], [0]>} : vector<1x8x8xbf16>, vector<1x8x32xbf16>, vector<1x8x32xf32> -> vector<1x8x32xf32>
    %186 = vector.extract_strided_slice %18 {offsets = [0, 0, 192], sizes = [1, 8, 32], strides = [1, 1, 1]} : vector<1x8x256xf32> to vector<1x8x32xf32>
    %187 = arith.truncf %186 : vector<1x8x32xf32> to vector<1x8x32xbf16>
    %188 = vector.extract_strided_slice %22 {offsets = [0, 0, 192], sizes = [1, 8, 32], strides = [1, 1, 1]} : vector<1x8x256xf32> to vector<1x8x32xf32>
    %189 = arith.truncf %188 : vector<1x8x32xf32> to vector<1x8x32xbf16>
    %190 = vector.extract_strided_slice %23 {offsets = [0, 0, 192], sizes = [1, 8, 32], strides = [1, 1, 1]} : vector<1x8x256xf32> to vector<1x8x32xf32>
    %191 = arith.mulf %190, %190 : vector<1x8x32xf32>
    %192 = arith.mulf %191, %190 : vector<1x8x32xf32>
    %193 = math.absf %192 : vector<1x8x32xf32>
    %cst_46 = arith.constant dense<0xFF800000> : vector<1x8xf32>
    %194 = vector.multi_reduction <maximumf>, %193, %cst_46 [2] : vector<1x8x32xf32> to vector<1x8xf32>
    %195 = vector.shape_cast %194 : vector<1x8xf32> to vector<1x8x1xf32>
    %cst_47 = arith.constant 9.99999935E-39 : f32
    %196 = vector.broadcast %cst_47 : f32 to vector<1x8x1xf32>
    %197 = arith.maximumf %195, %196 : vector<1x8x1xf32>
    %198 = tpu.reciprocal %197 {approx = true} : vector<1x8x1xf32> -> vector<1x8x1xf32>
    %199 = vector.broadcast %198 : vector<1x8x1xf32> to vector<1x8x32xf32>
    %200 = arith.mulf %192, %199 : vector<1x8x32xf32>
    %cst_48 = arith.constant dense<0.000000e+00> : vector<1x8x8xf32>
    %201 = tpu.matmul %187, %189, %cst_48 {dimension_numbers = #tpu.dot_dimension_numbers<[2], [2], [1], [1], [0, 0, 0, 1, 1, 1], [0], [0]>} : vector<1x8x32xbf16>, vector<1x8x32xbf16>, vector<1x8x8xf32> -> vector<1x8x8xf32>
    %202 = arith.mulf %201, %201 : vector<1x8x8xf32>
    %cst_49 = arith.constant dense<0.000000e+00> : vector<1x8xf32>
    %203 = vector.multi_reduction <add>, %202, %cst_49 [2] : vector<1x8x8xf32> to vector<1x8xf32>
    %204 = vector.shape_cast %203 : vector<1x8xf32> to vector<1x8x1xf32>
    %cst_50 = arith.constant 9.99999935E-39 : f32
    %205 = vector.broadcast %cst_50 : f32 to vector<1x8x1xf32>
    %206 = arith.maximumf %204, %205 : vector<1x8x1xf32>
    %207 = tpu.reciprocal %206 {approx = true} : vector<1x8x1xf32> -> vector<1x8x1xf32>
    %208 = vector.broadcast %207 : vector<1x8x1xf32> to vector<1x8x8xf32>
    %209 = arith.mulf %202, %208 : vector<1x8x8xf32>
    %210 = arith.truncf %209 : vector<1x8x8xf32> to vector<1x8x8xbf16>
    %211 = arith.truncf %200 : vector<1x8x32xf32> to vector<1x8x32xbf16>
    %cst_51 = arith.constant dense<0.000000e+00> : vector<1x8x32xf32>
    %212 = tpu.matmul %210, %211, %cst_51 {dimension_numbers = #tpu.dot_dimension_numbers<[2], [1], [1], [2], [0, 0, 0, 1, 1, 2], [0], [0]>} : vector<1x8x8xbf16>, vector<1x8x32xbf16>, vector<1x8x32xf32> -> vector<1x8x32xf32>
    %213 = vector.extract_strided_slice %18 {offsets = [0, 0, 224], sizes = [1, 8, 32], strides = [1, 1, 1]} : vector<1x8x256xf32> to vector<1x8x32xf32>
    %214 = arith.truncf %213 : vector<1x8x32xf32> to vector<1x8x32xbf16>
    %215 = vector.extract_strided_slice %22 {offsets = [0, 0, 224], sizes = [1, 8, 32], strides = [1, 1, 1]} : vector<1x8x256xf32> to vector<1x8x32xf32>
    %216 = arith.truncf %215 : vector<1x8x32xf32> to vector<1x8x32xbf16>
    %217 = vector.extract_strided_slice %23 {offsets = [0, 0, 224], sizes = [1, 8, 32], strides = [1, 1, 1]} : vector<1x8x256xf32> to vector<1x8x32xf32>
    %218 = arith.mulf %217, %217 : vector<1x8x32xf32>
    %219 = arith.mulf %218, %217 : vector<1x8x32xf32>
    %220 = math.absf %219 : vector<1x8x32xf32>
    %cst_52 = arith.constant dense<0xFF800000> : vector<1x8xf32>
    %221 = vector.multi_reduction <maximumf>, %220, %cst_52 [2] : vector<1x8x32xf32> to vector<1x8xf32>
    %222 = vector.shape_cast %221 : vector<1x8xf32> to vector<1x8x1xf32>
    %cst_53 = arith.constant 9.99999935E-39 : f32
    %223 = vector.broadcast %cst_53 : f32 to vector<1x8x1xf32>
    %224 = arith.maximumf %222, %223 : vector<1x8x1xf32>
    %225 = tpu.reciprocal %224 {approx = true} : vector<1x8x1xf32> -> vector<1x8x1xf32>
    %226 = vector.broadcast %225 : vector<1x8x1xf32> to vector<1x8x32xf32>
    %227 = arith.mulf %219, %226 : vector<1x8x32xf32>
    %cst_54 = arith.constant dense<0.000000e+00> : vector<1x8x8xf32>
    %228 = tpu.matmul %214, %216, %cst_54 {dimension_numbers = #tpu.dot_dimension_numbers<[2], [2], [1], [1], [0, 0, 0, 1, 1, 1], [0], [0]>} : vector<1x8x32xbf16>, vector<1x8x32xbf16>, vector<1x8x8xf32> -> vector<1x8x8xf32>
    %229 = arith.mulf %228, %228 : vector<1x8x8xf32>
    %cst_55 = arith.constant dense<0.000000e+00> : vector<1x8xf32>
    %230 = vector.multi_reduction <add>, %229, %cst_55 [2] : vector<1x8x8xf32> to vector<1x8xf32>
    %231 = vector.shape_cast %230 : vector<1x8xf32> to vector<1x8x1xf32>
    %cst_56 = arith.constant 9.99999935E-39 : f32
    %232 = vector.broadcast %cst_56 : f32 to vector<1x8x1xf32>
    %233 = arith.maximumf %231, %232 : vector<1x8x1xf32>
    %234 = tpu.reciprocal %233 {approx = true} : vector<1x8x1xf32> -> vector<1x8x1xf32>
    %235 = vector.broadcast %234 : vector<1x8x1xf32> to vector<1x8x8xf32>
    %236 = arith.mulf %229, %235 : vector<1x8x8xf32>
    %237 = arith.truncf %236 : vector<1x8x8xf32> to vector<1x8x8xbf16>
    %238 = arith.truncf %227 : vector<1x8x32xf32> to vector<1x8x32xbf16>
    %cst_57 = arith.constant dense<0.000000e+00> : vector<1x8x32xf32>
    %239 = tpu.matmul %237, %238, %cst_57 {dimension_numbers = #tpu.dot_dimension_numbers<[2], [1], [1], [2], [0, 0, 0, 1, 1, 2], [0], [0]>} : vector<1x8x8xbf16>, vector<1x8x32xbf16>, vector<1x8x32xf32> -> vector<1x8x32xf32>
    %240 = tpu.concatenate %50, %77, %104, %131, %158, %185, %212, %239 in 2 : vector<1x8x32xf32>, vector<1x8x32xf32>, vector<1x8x32xf32>, vector<1x8x32xf32>, vector<1x8x32xf32>, vector<1x8x32xf32>, vector<1x8x32xf32>, vector<1x8x32xf32> -> vector<1x8x256xf32>
    %241 = arith.addf %0, %240 : vector<1x8x256xf32>
    %c0_58 = arith.constant 0 : index
    %c0_59 = arith.constant 0 : index
    %c0_60 = arith.constant 0 : index
    %242 = vector.load %arg6[%c0_58, %c0_59, %c0_60] : memref<1x8x256xf32, #tpu.memory_space<vmem>>, vector<1x8x256xf32>
    tpu.vector_store %arg6[%c0_58, %c0_59, %c0_60], %241 {strides = array<i32>} : memref<1x8x256xf32, #tpu.memory_space<vmem>>, vector<1x8x256xf32>,
    return
  }
  func.func @transform_0(%arg0: i32) -> (i32, i32, i32) {
    %c0_i32 = arith.constant 0 : i32
    %c0_i32_0 = arith.constant 0 : i32
    %c0_i32_1 = arith.constant 0 : i32
    return %arg0, %c0_i32, %c0_i32_0 : i32, i32, i32
  }
  func.func @transform_1(%arg0: i32) -> (i32, i32) {
    %c0_i32 = arith.constant 0 : i32
    %c0_i32_0 = arith.constant 0 : i32
    %c0_i32_1 = arith.constant 0 : i32
    return %c0_i32, %c0_i32_0 : i32, i32
  }
  func.func @transform_2(%arg0: i32) -> (i32, i32) {
    %c0_i32 = arith.constant 0 : i32
    %c0_i32_0 = arith.constant 0 : i32
    %c0_i32_1 = arith.constant 0 : i32
    return %c0_i32, %c0_i32_0 : i32, i32
  }
  func.func @transform_3(%arg0: i32) -> (i32, i32) {
    %c0_i32 = arith.constant 0 : i32
    %c0_i32_0 = arith.constant 0 : i32
    %c0_i32_1 = arith.constant 0 : i32
    return %c0_i32, %c0_i32_0 : i32, i32
  }
  func.func @transform_4(%arg0: i32) -> (i32, i32) {
    %c0_i32 = arith.constant 0 : i32
    %c0_i32_0 = arith.constant 0 : i32
    %c0_i32_1 = arith.constant 0 : i32
    return %c0_i32, %c0_i32_0 : i32, i32
  }
  func.func @transform_5(%arg0: i32) -> (i32, i32, i32) {
    %c0_i32 = arith.constant 0 : i32
    %c0_i32_0 = arith.constant 0 : i32
    %c0_i32_1 = arith.constant 0 : i32
    return %arg0, %c0_i32, %c0_i32_0 : i32, i32, i32
  }
}

</mosaic_0001>

<llo_original>
// kernel: tpu_custom_call.1
$region0: #{tpu_custom_call.1}
  #allocation0 [shape = 'u32[]', space=smem, size = 0x4, offset = 0x4, fixed_abs, tag = 'smem constant byte address 0x4 - core index']
  #allocation1 [shape = 'u32[144,128]{1,0:T(1,128)}', space=vmem, size = 0x12000, scoped, tag = 'internal scratch']
  %s0 = inlined_call_operand.hbm [shape: f32[2,8,256], index: 0, kind: input, shape index: {}, may-alias: {0,5}]
  %s1 = inlined_call_operand.hbm [shape: bf16[256,1280], index: 1, kind: input, shape index: {}]
  %s2 = inlined_call_operand.vmem [shape: f32[1,1280], index: 2, kind: input, shape index: {}]
  %s3 = inlined_call_operand.vmem [shape: f32[8,256], index: 3, kind: input, shape index: {}]
  %s4 = inlined_call_operand.vmem [shape: f32[8,256], index: 4, kind: input, shape index: {}]
  %s5 = inlined_call_operand.hbm [shape: f32[2,8,256], index: 5, kind: output, shape index: {}, may-alias: {0,5}]
  %s6 = sld [smem:[#allocation0]]
  $region61: #{tpu_custom_call.1} parent=0
    _
  %s8 = ssub.s32 1, %s6
  %s9 = scalar_select 0, %s8, %s6
  $region1: #{tpu_custom_call.1} parent=0
    #allocation2 [shape = 'u8[16384]{0}', space=vmem, size = 0x4000, scoped, tag = 'input window, operand 0']
    #allocation3 [shape = 's32[2]{0}', space=sflag, size = 0x8, scoped, tag = 'scoped memory for tpu_custom_call.1']
    #allocation4 [shape = 's32[2]{0}', space=sflag, size = 0x8, scoped, tag = 'scoped memory for tpu_custom_call.1']
    #allocation5 [shape = 'u8[655360]{0}', space=vmem, size = 0xa0000, scoped, tag = 'input window, operand 1, single buffered']
    #allocation6 [shape = 's32[1]{0}', space=sflag, size = 0x4, scoped, tag = 'scoped memory for tpu_custom_call.1']
    #allocation7 [shape = 'u8[16384]{0}', space=vmem, size = 0x4000, scoped, tag = 'output window, operand 0']
    %10 = vsyncpa [#allocation3], 0
    %s11 = scalar_lea.sflag [#allocation3], 1
    %12 = vsyncpa %s11, 0
    %13 = vsyncpa [#allocation6], 0
    %14 = vsyncpa [#allocation4], 0
    %s15 = scalar_lea.sflag [#allocation4], 1
    %16 = vsyncpa %s15, 0
    loop: start=0, step=1, limit=4
    $region2: #{tpu_custom_call.1} parent=1 // loop_pre_header
      _
    $region3: #{tpu_custom_call.1} parent=1 // loop_header
      %s18 = sphi 0, %s22
      %p19 = scmp.ge.s32.totalorder %s18, 4
      %s28 = sphi 0, %s30
      %s31 = sphi 0, %s28
      %s32 = sphi 0, %s31
      %s48 = sphi 0, %s32
      %s52 = sphi 0, %s52
      %s54 = sphi 0, %s52
      %s55 = sphi 0, %s54
      %s69 = sphi 0, %s55
      %s73 = sphi 0, %s73
      %s75 = sphi 0, %s73
      %s76 = sphi 0, %s75
      %s90 = sphi 0, %s76
      %s94 = sphi 0, %s94
      %s96 = sphi 0, %s94
      %s97 = sphi 0, %s96
      %s111 = sphi 0, %s97
      %s115 = sphi 0, %s115
      %s117 = sphi 0, %s115
      %s118 = sphi 0, %s117
      %s132 = sphi 0, %s118
      %s138 = sphi 0, %s140
      %s141 = sphi 0, %s138
      %s142 = sphi 0, %s141
      %s158 = sphi 0, %s142
    $region4: #{tpu_custom_call.1} parent=1 // loop_header_branch
      %21 = sbr.rel (%p19) target = $region8
    $region5: #{tpu_custom_call.1} parent=1 // loop_body
      %s23 = ssub.s32 %s18, 1
      %s24 = ssub.s32 %s18, 2
      %s25 = sadd.s32 %s18, 1
      %s26 = ssub.s32 %s18, %s25
      %p27 = scmp.eq.s32.totalorder %s26, 0
      %s29 = sadd.s32 %s28, 1
      %s30 = scalar_select %p27, %s28, %s29
      %p33 = pneg %p27
      %p34 = scmp.eq.s32.totalorder %s18, 1
      %p35 = por %p33, %p34
      %p36 = scmp.ne.s32.totalorder %s28, %s31
      %p37 = scmp.eq.s32.totalorder %s18, 0
      %p38 = por %p36, %p37
      %p39 = scmp.ne.s32.totalorder %s28, %s31
      %p40 = scmp.eq.s32.totalorder %s23, 1
      %p41 = por %p39, %p40
      %p42 = scmp.ne.s32.totalorder %s31, %s32
      %p43 = scmp.eq.s32.totalorder %s23, 0
      %p44 = por %p42, %p43
      %p45 = scmp.ne.s32.totalorder %s31, %s32
      %p46 = scmp.eq.s32.totalorder %s24, 1
      %p47 = por %p45, %p46
      %p49 = scmp.ne.s32.totalorder %s32, %s48
      %p50 = scmp.eq.s32.totalorder %s24, 0
      %p51 = por %p49, %p50
      %s53 = sadd.s32 %s52, 1
      %p56 = scmp.eq.s32.totalorder %s18, 1
      %p57 = scmp.ne.s32.totalorder %s52, %s54
      %p58 = scmp.eq.s32.totalorder %s18, 0
      %p59 = por %p57, %p58
      %p60 = scmp.ne.s32.totalorder %s52, %s54
      %p61 = scmp.eq.s32.totalorder %s23, 1
      %p62 = por %p60, %p61
      %p63 = scmp.ne.s32.totalorder %s54, %s55
      %p64 = scmp.eq.s32.totalorder %s23, 0
      %p65 = por %p63, %p64
      %p66 = scmp.ne.s32.totalorder %s54, %s55
      %p67 = scmp.eq.s32.totalorder %s24, 1
      %p68 = por %p66, %p67
      %p70 = scmp.ne.s32.totalorder %s55, %s69
      %p71 = scmp.eq.s32.totalorder %s24, 0
      %p72 = por %p70, %p71
      %s74 = sadd.s32 %s73, 1
      %p77 = scmp.eq.s32.totalorder %s18, 1
      %p78 = scmp.ne.s32.totalorder %s73, %s75
      %p79 = scmp.eq.s32.totalorder %s18, 0
      %p80 = por %p78, %p79
      %p81 = scmp.ne.s32.totalorder %s73, %s75
      %p82 = scmp.eq.s32.totalorder %s23, 1
      %p83 = por %p81, %p82
      %p84 = scmp.ne.s32.totalorder %s75, %s76
      %p85 = scmp.eq.s32.totalorder %s23, 0
      %p86 = por %p84, %p85
      %p87 = scmp.ne.s32.totalorder %s75, %s76
      %p88 = scmp.eq.s32.totalorder %s24, 1
      %p89 = por %p87, %p88
      %p91 = scmp.ne.s32.totalorder %s76, %s90
      %p92 = scmp.eq.s32.totalorder %s24, 0
      %p93 = por %p91, %p92
      %s95 = sadd.s32 %s94, 1
      %p98 = scmp.eq.s32.totalorder %s18, 1
      %p99 = scmp.ne.s32.totalorder %s94, %s96
      %p100 = scmp.eq.s32.totalorder %s18, 0
      %p101 = por %p99, %p100
      %p102 = scmp.ne.s32.totalorder %s94, %s96
      %p103 = scmp.eq.s32.totalorder %s23, 1
      %p104 = por %p102, %p103
      %p105 = scmp.ne.s32.totalorder %s96, %s97
      %p106 = scmp.eq.s32.totalorder %s23, 0
      %p107 = por %p105, %p106
      %p108 = scmp.ne.s32.totalorder %s96, %s97
      %p109 = scmp.eq.s32.totalorder %s24, 1
      %p110 = por %p108, %p109
      %p112 = scmp.ne.s32.totalorder %s97, %s111
      %p113 = scmp.eq.s32.totalorder %s24, 0
      %p114 = por %p112, %p113
      %s116 = sadd.s32 %s115, 1
      %p119 = scmp.eq.s32.totalorder %s18, 1
      %p120 = scmp.ne.s32.totalorder %s115, %s117
      %p121 = scmp.eq.s32.totalorder %s18, 0
      %p122 = por %p120, %p121
      %p123 = scmp.ne.s32.totalorder %s115, %s117
      %p124 = scmp.eq.s32.totalorder %s23, 1
      %p125 = por %p123, %p124
      %p126 = scmp.ne.s32.totalorder %s117, %s118
      %p127 = scmp.eq.s32.totalorder %s23, 0
      %p128 = por %p126, %p127
      %p129 = scmp.ne.s32.totalorder %s117, %s118
      %p130 = scmp.eq.s32.totalorder %s24, 1
      %p131 = por %p129, %p130
      %p133 = scmp.ne.s32.totalorder %s118, %s132
      %p134 = scmp.eq.s32.totalorder %s24, 0
      %p135 = por %p133, %p134
      %s136 = ssub.s32 %s18, %s25
      %p137 = scmp.eq.s32.totalorder %s136, 0
      %s139 = sadd.s32 %s138, 1
      %s140 = scalar_select %p137, %s138, %s139
      %p143 = pneg %p137
      %p144 = scmp.eq.s32.totalorder %s18, 1
      %p145 = por %p143, %p144
      %p146 = scmp.ne.s32.totalorder %s138, %s141
      %p147 = scmp.eq.s32.totalorder %s18, 0
      %p148 = por %p146, %p147
      %p149 = scmp.ne.s32.totalorder %s138, %s141
      %p150 = scmp.eq.s32.totalorder %s23, 1
      %p151 = por %p149, %p150
      %p152 = scmp.ne.s32.totalorder %s141, %s142
      %p153 = scmp.eq.s32.totalorder %s23, 0
      %p154 = por %p152, %p153
      %p155 = scmp.ne.s32.totalorder %s141, %s142
      %p156 = scmp.eq.s32.totalorder %s24, 1
      %p157 = por %p155, %p156
      %p159 = scmp.ne.s32.totalorder %s142, %s158
      %p160 = scmp.eq.s32.totalorder %s24, 0
      %p161 = por %p159, %p160
      %p162 = scmp.le.s32.totalorder 1, %s18
      %p163 = scmp.lt.s32.totalorder %s18, 3
      %p164 = pnand %p162, %p163
      %p165 = pneg %p164
      // Predicated region
      $region9: #{tpu_custom_call.1} parent=5 // pred_check
        _
      $region10: #{tpu_custom_call.1} parent=5 // pred_check_branch
        %167 = sbr.rel (%p164) target = $region12
      $region11: #{tpu_custom_call.1} parent=5 // pred_region
        %s168 = ssub.s32 %s18, 1
        // Predicated region
        $region13: #{tpu_custom_call.1} parent=11 // pred_check
          %p169 = pneg %p65
        $region14: #{tpu_custom_call.1} parent=11 // pred_check_branch
          %171 = sbr.rel (%p169) target = $region16
        $region15: #{tpu_custom_call.1} parent=11 // pred_region
          %s173 = ssub.s32 20480, 20480
          %174 = vsyncadd [#allocation6], %s173
          %s175 = sshll.u32 [#allocation5], 4
          %s176 = int_to_ptr.vmem [resolvable:$true] %s175
          %181 = dma.hbm_to_vmem [thread:$0]  %s1, 20480, %s176, [#allocation6], 640, 640, 40
        $region16: #{tpu_custom_call.1} parent=11 // pred_fallthru
          _
        // Predicated region
        $region17: #{tpu_custom_call.1} parent=11 // pred_check
          %p182 = pneg %p86
        $region18: #{tpu_custom_call.1} parent=11 // pred_check_branch
          %184 = sbr.rel (%p182) target = $region20
        $region19: #{tpu_custom_call.1} parent=11 // pred_region
          _
        $region20: #{tpu_custom_call.1} parent=11 // pred_fallthru
          _
        // Predicated region
        $region21: #{tpu_custom_call.1} parent=11 // pred_check
          %p185 = pneg %p107
        $region22: #{tpu_custom_call.1} parent=11 // pred_check_branch
          %187 = sbr.rel (%p185) target = $region24
        $region23: #{tpu_custom_call.1} parent=11 // pred_region
          _
        $region24: #{tpu_custom_call.1} parent=11 // pred_fallthru
          _
        // Predicated region
        $region25: #{tpu_custom_call.1} parent=11 // pred_check
          %p188 = pneg %p128
        $region26: #{tpu_custom_call.1} parent=11 // pred_check_branch
          %190 = sbr.rel (%p188) target = $region28
        $region27: #{tpu_custom_call.1} parent=11 // pred_region
          _
        $region28: #{tpu_custom_call.1} parent=11 // pred_fallthru
          _
      $region12: #{tpu_custom_call.1} parent=5 // pred_fallthru
        _
      %p191 = scmp.lt.s32.totalorder %s18, 2
      // Predicated region
      $region29: #{tpu_custom_call.1} parent=5 // pred_check
        %p192 = pneg %p191
      $region30: #{tpu_custom_call.1} parent=5 // pred_check_branch
        %194 = sbr.rel (%p192) target = $region32
      $region31: #{tpu_custom_call.1} parent=5 // pred_region
        // Predicated region
        $region33: #{tpu_custom_call.1} parent=31 // pred_check
          %p195 = pneg %p38
        $region34: #{tpu_custom_call.1} parent=31 // pred_check_branch
          %197 = sbr.rel (%p195) target = $region36
        $region35: #{tpu_custom_call.1} parent=31 // pred_region
          %s198 = sand.u32 %s28, 1
          %s199 = scalar_lea.sflag [#allocation3], %s198
          %s200 = sand.u32 %s28, 1
          %s201 = smul.addr %s200, 16
          %s202 = scalar_lea.vmem [#allocation2], %s201
          %s204 = ssub.s32 256, 256
          %205 = vsyncadd %s199, %s204
          %s206 = smul.addr %s18, 2
          %s207 = smul.addr %s206, 128
          %s208 = scalar_lea.hbm %s0, %s207
          %s210 = sshll.u32 %s202, 4
          %s211 = int_to_ptr.vmem [resolvable:$true] %s210
          %213 = dma.hbm_to_vmem [thread:$0]  %s208, 256, %s211, %s199
        $region36: #{tpu_custom_call.1} parent=31 // pred_fallthru
          _
      $region32: #{tpu_custom_call.1} parent=5 // pred_fallthru
        _
      %p214 = scmp.le.s32.totalorder 1, %s18
      %p215 = scmp.lt.s32.totalorder %s18, 3
      %p216 = pnand %p214, %p215
      %p217 = pneg %p216
      // Predicated region
      $region37: #{tpu_custom_call.1} parent=5 // pred_check
        _
      $region38: #{tpu_custom_call.1} parent=5 // pred_check_branch
        %219 = sbr.rel (%p216) target = $region40
      $region39: #{tpu_custom_call.1} parent=5 // pred_region
        %s220 = ssub.s32 %s18, 1
        %s221 = sand.u32 %s31, 1
        %s222 = scalar_lea.sflag [#allocation3], %s221
        %s223 = sand.u32 %s31, 1
        %s224 = smul.addr %s223, 16
        %s225 = scalar_lea.vmem [#allocation2], %s224
        // Predicated region
        $region41: #{tpu_custom_call.1} parent=39 // pred_check
          %p226 = pneg %p44
        $region42: #{tpu_custom_call.1} parent=39 // pred_check_branch
          %228 = sbr.rel (%p226) target = $region44
        $region43: #{tpu_custom_call.1} parent=39 // pred_region
          %229 = dma.done %s222, 256
        $region44: #{tpu_custom_call.1} parent=39 // pred_fallthru
          _
        // Predicated region
        $region45: #{tpu_custom_call.1} parent=39 // pred_check
          %p230 = pneg %p65
        $region46: #{tpu_custom_call.1} parent=39 // pred_check_branch
          %232 = sbr.rel (%p230) target = $region48
        $region47: #{tpu_custom_call.1} parent=39 // pred_region
          %233 = dma.done [#allocation6], 20480
        $region48: #{tpu_custom_call.1} parent=39 // pred_fallthru
          _
        %s234 = sand.u32 %s31, 1
        %s235 = scalar_lea.sflag [#allocation3], %s234
        %s236 = sand.u32 %s31, 1
        %s237 = smul.addr %s236, 16
        %s238 = scalar_lea.vmem [#allocation2], %s237
        %p239 = pneg %p44
        %p240 = pneg %p41
        %p241 = pneg %p65
        %p242 = pneg %p62
        %p243 = pneg %p86
        %p244 = pneg %p83
        %p245 = pneg %p107
        %p246 = pneg %p104
        %p247 = pneg %p128
        %p248 = pneg %p125
        %p249 = pneg %p154
        %p250 = pneg %p151
        %s251 = sand.u32 %s141, 1
        %s252 = scalar_lea.sflag [#allocation4], %s251
        %s253 = sand.u32 %s141, 1
        %s254 = smul.addr %s253, 16
        %s255 = scalar_lea.vmem [#allocation7], %s254
        %v257 = vld [vmem:[%s225] sm:$0xff]
        %v258 = vld [vmem:[%s225 + $0x8] sm:$0xff]
        %v259 = vpack.c.bf16 %v257, %v257
        %v260 = vpack.c.bf16 %v258, %v258
        %v261 = vld [vmem:[#allocation5] sm:$0xff]
        %v262 = vld [vmem:[#allocation5 + $0x8] sm:$0xff]
        %v263 = vld [vmem:[#allocation5 + $0x10] sm:$0xff]
        %v264 = vld [vmem:[#allocation5 + $0x18] sm:$0xff]
        %v265 = vld [vmem:[#allocation5 + $0x20] sm:$0xff]
        %v266 = vld [vmem:[#allocation5 + $0x28] sm:$0xff]
        %v267 = vld [vmem:[#allocation5 + $0x30] sm:$0xff]
        %v268 = vld [vmem:[#allocation5 + $0x38] sm:$0xff]
        %v269 = vld [vmem:[#allocation5 + $0x40] sm:$0xff]
        %v270 = vld [vmem:[#allocation5 + $0x48] sm:$0xff]
        %v271 = vld [vmem:[#allocation5 + $0x50] sm:$0xff]
        %v272 = vld [vmem:[#allocation5 + $0x58] sm:$0xff]
        %v273 = vld [vmem:[#allocation5 + $0x60] sm:$0xff]
        %v274 = vld [vmem:[#allocation5 + $0x68] sm:$0xff]
        %v275 = vld [vmem:[#allocation5 + $0x70] sm:$0xff]
        %v276 = vld [vmem:[#allocation5 + $0x78] sm:$0xff]
        %v277 = vld [vmem:[#allocation5 + $0x80] sm:$0xff]
        %v278 = vld [vmem:[#allocation5 + $0x88] sm:$0xff]
        %v279 = vld [vmem:[#allocation5 + $0x90] sm:$0xff]
        %v280 = vld [vmem:[#allocation5 + $0x98] sm:$0xff]
        %v281 = vld [vmem:[#allocation5 + $0xa0] sm:$0xff]
        %v282 = vld [vmem:[#allocation5 + $0xa8] sm:$0xff]
        %v283 = vld [vmem:[#allocation5 + $0xb0] sm:$0xff]
        %v284 = vld [vmem:[#allocation5 + $0xb8] sm:$0xff]
        %v285 = vld [vmem:[#allocation5 + $0xc0] sm:$0xff]
        %v286 = vld [vmem:[#allocation5 + $0xc8] sm:$0xff]
        %v287 = vld [vmem:[#allocation5 + $0xd0] sm:$0xff]
        %v288 = vld [vmem:[#allocation5 + $0xd8] sm:$0xff]
        %v289 = vld [vmem:[#allocation5 + $0xe0] sm:$0xff]
        %v290 = vld [vmem:[#allocation5 + $0xe8] sm:$0xff]
        %v291 = vld [vmem:[#allocation5 + $0xf0] sm:$0xff]
        %v292 = vld [vmem:[#allocation5 + $0xf8] sm:$0xff]
        %v293 = vld [vmem:[#allocation5 + $0x100] sm:$0xff]
        %v294 = vld [vmem:[#allocation5 + $0x108] sm:$0xff]
        %v295 = vld [vmem:[#allocation5 + $0x110] sm:$0xff]
        %v296 = vld [vmem:[#allocation5 + $0x118] sm:$0xff]
        %v297 = vld [vmem:[#allocation5 + $0x120] sm:$0xff]
        %v298 = vld [vmem:[#allocation5 + $0x128] sm:$0xff]
        %v299 = vld [vmem:[#allocation5 + $0x130] sm:$0xff]
        %v300 = vld [vmem:[#allocation5 + $0x138] sm:$0xff]
        %v301 = vld [vmem:[#allocation5 + $0x140] sm:$0xff]
        %v302 = vld [vmem:[#allocation5 + $0x148] sm:$0xff]
        %v303 = vld [vmem:[#allocation5 + $0x150] sm:$0xff]
        %v304 = vld [vmem:[#allocation5 + $0x158] sm:$0xff]
        %v305 = vld [vmem:[#allocation5 + $0x160] sm:$0xff]
        %v306 = vld [vmem:[#allocation5 + $0x168] sm:$0xff]
        %v307 = vld [vmem:[#allocation5 + $0x170] sm:$0xff]
        %v308 = vld [vmem:[#allocation5 + $0x178] sm:$0xff]
        %v309 = vld [vmem:[#allocation5 + $0x180] sm:$0xff]
        %v310 = vld [vmem:[#allocation5 + $0x188] sm:$0xff]
        %v311 = vld [vmem:[#allocation5 + $0x190] sm:$0xff]
        %v312 = vld [vmem:[#allocation5 + $0x198] sm:$0xff]
        %v313 = vld [vmem:[#allocation5 + $0x1a0] sm:$0xff]
        %v314 = vld [vmem:[#allocation5 + $0x1a8] sm:$0xff]
        %v315 = vld [vmem:[#allocation5 + $0x1b0] sm:$0xff]
        %v316 = vld [vmem:[#allocation5 + $0x1b8] sm:$0xff]
        %v317 = vld [vmem:[#allocation5 + $0x1c0] sm:$0xff]
        %v318 = vld [vmem:[#allocation5 + $0x1c8] sm:$0xff]
        %v319 = vld [vmem:[#allocation5 + $0x1d0] sm:$0xff]
        %v320 = vld [vmem:[#allocation5 + $0x1d8] sm:$0xff]
        %v321 = vld [vmem:[#allocation5 + $0x1e0] sm:$0xff]
        %v322 = vld [vmem:[#allocation5 + $0x1e8] sm:$0xff]
        %v323 = vld [vmem:[#allocation5 + $0x1f0] sm:$0xff]
        %v324 = vld [vmem:[#allocation5 + $0x1f8] sm:$0xff]
        %v325 = vld [vmem:[#allocation5 + $0x200] sm:$0xff]
        %v326 = vld [vmem:[#allocation5 + $0x208] sm:$0xff]
        %v327 = vld [vmem:[#allocation5 + $0x210] sm:$0xff]
        %v328 = vld [vmem:[#allocation5 + $0x218] sm:$0xff]
        %v329 = vld [vmem:[#allocation5 + $0x220] sm:$0xff]
        %v330 = vld [vmem:[#allocation5 + $0x228] sm:$0xff]
        %v331 = vld [vmem:[#allocation5 + $0x230] sm:$0xff]
        %v332 = vld [vmem:[#allocation5 + $0x238] sm:$0xff]
        %v333 = vld [vmem:[#allocation5 + $0x240] sm:$0xff]
        %v334 = vld [vmem:[#allocation5 + $0x248] sm:$0xff]
        %v335 = vld [vmem:[#allocation5 + $0x250] sm:$0xff]
        %v336 = vld [vmem:[#allocation5 + $0x258] sm:$0xff]
        %v337 = vld [vmem:[#allocation5 + $0x260] sm:$0xff]
        %v338 = vld [vmem:[#allocation5 + $0x268] sm:$0xff]
        %v339 = vld [vmem:[#allocation5 + $0x270] sm:$0xff]
        %v340 = vld [vmem:[#allocation5 + $0x278] sm:$0xff]
        %v341 = vld [vmem:[#allocation5 + $0x280] sm:$0xff]
        %v342 = vld [vmem:[#allocation5 + $0x288] sm:$0xff]
        %v343 = vld [vmem:[#allocation5 + $0x290] sm:$0xff]
        %v344 = vld [vmem:[#allocation5 + $0x298] sm:$0xff]
        %v345 = vld [vmem:[#allocation5 + $0x2a0] sm:$0xff]
        %v346 = vld [vmem:[#allocation5 + $0x2a8] sm:$0xff]
        %v347 = vld [vmem:[#allocation5 + $0x2b0] sm:$0xff]
        %v348 = vld [vmem:[#allocation5 + $0x2b8] sm:$0xff]
        %v349 = vld [vmem:[#allocation5 + $0x2c0] sm:$0xff]
        %v350 = vld [vmem:[#allocation5 + $0x2c8] sm:$0xff]
        %v351 = vld [vmem:[#allocation5 + $0x2d0] sm:$0xff]
        %v352 = vld [vmem:[#allocation5 + $0x2d8] sm:$0xff]
        %v353 = vld [vmem:[#allocation5 + $0x2e0] sm:$0xff]
        %v354 = vld [vmem:[#allocation5 + $0x2e8] sm:$0xff]
        %v355 = vld [vmem:[#allocation5 + $0x2f0] sm:$0xff]
        %v356 = vld [vmem:[#allocation5 + $0x2f8] sm:$0xff]
        %v357 = vld [vmem:[#allocation5 + $0x300] sm:$0xff]
        %v358 = vld [vmem:[#allocation5 + $0x308] sm:$0xff]
        %v359 = vld [vmem:[#allocation5 + $0x310] sm:$0xff]
        %v360 = vld [vmem:[#allocation5 + $0x318] sm:$0xff]
        %v361 = vld [vmem:[#allocation5 + $0x320] sm:$0xff]
        %v362 = vld [vmem:[#allocation5 + $0x328] sm:$0xff]
        %v363 = vld [vmem:[#allocation5 + $0x330] sm:$0xff]
        %v364 = vld [vmem:[#allocation5 + $0x338] sm:$0xff]
        %v365 = vld [vmem:[#allocation5 + $0x340] sm:$0xff]
        %v366 = vld [vmem:[#allocation5 + $0x348] sm:$0xff]
        %v367 = vld [vmem:[#allocation5 + $0x350] sm:$0xff]
        %v368 = vld [vmem:[#allocation5 + $0x358] sm:$0xff]
        %v369 = vld [vmem:[#allocation5 + $0x360] sm:$0xff]
        %v370 = vld [vmem:[#allocation5 + $0x368] sm:$0xff]
        %v371 = vld [vmem:[#allocation5 + $0x370] sm:$0xff]
        %v372 = vld [vmem:[#allocation5 + $0x378] sm:$0xff]
        %v373 = vld [vmem:[#allocation5 + $0x380] sm:$0xff]
        %v374 = vld [vmem:[#allocation5 + $0x388] sm:$0xff]
        %v375 = vld [vmem:[#allocation5 + $0x390] sm:$0xff]
        %v376 = vld [vmem:[#allocation5 + $0x398] sm:$0xff]
        %v377 = vld [vmem:[#allocation5 + $0x3a0] sm:$0xff]
        %v378 = vld [vmem:[#allocation5 + $0x3a8] sm:$0xff]
        %v379 = vld [vmem:[#allocation5 + $0x3b0] sm:$0xff]
        %v380 = vld [vmem:[#allocation5 + $0x3b8] sm:$0xff]
        %v381 = vld [vmem:[#allocation5 + $0x3c0] sm:$0xff]
        %v382 = vld [vmem:[#allocation5 + $0x3c8] sm:$0xff]
        %v383 = vld [vmem:[#allocation5 + $0x3d0] sm:$0xff]
        %v384 = vld [vmem:[#allocation5 + $0x3d8] sm:$0xff]
        %v385 = vld [vmem:[#allocation5 + $0x3e0] sm:$0xff]
        %v386 = vld [vmem:[#allocation5 + $0x3e8] sm:$0xff]
        %v387 = vld [vmem:[#allocation5 + $0x3f0] sm:$0xff]
        %v388 = vld [vmem:[#allocation5 + $0x3f8] sm:$0xff]
        %v389 = vld [vmem:[#allocation5 + $0x400] sm:$0xff]
        %v390 = vld [vmem:[#allocation5 + $0x408] sm:$0xff]
        %v391 = vld [vmem:[#allocation5 + $0x410] sm:$0xff]
        %v392 = vld [vmem:[#allocation5 + $0x418] sm:$0xff]
        %v393 = vld [vmem:[#allocation5 + $0x420] sm:$0xff]
        %v394 = vld [vmem:[#allocation5 + $0x428] sm:$0xff]
        %v395 = vld [vmem:[#allocation5 + $0x430] sm:$0xff]
        %v396 = vld [vmem:[#allocation5 + $0x438] sm:$0xff]
        %v397 = vld [vmem:[#allocation5 + $0x440] sm:$0xff]
        %v398 = vld [vmem:[#allocation5 + $0x448] sm:$0xff]
        %v399 = vld [vmem:[#allocation5 + $0x450] sm:$0xff]
        %v400 = vld [vmem:[#allocation5 + $0x458] sm:$0xff]
        %v401 = vld [vmem:[#allocation5 + $0x460] sm:$0xff]
        %v402 = vld [vmem:[#allocation5 + $0x468] sm:$0xff]
        %v403 = vld [vmem:[#allocation5 + $0x470] sm:$0xff]
        %v404 = vld [vmem:[#allocation5 + $0x478] sm:$0xff]
        %v405 = vld [vmem:[#allocation5 + $0x480] sm:$0xff]
        %v406 = vld [vmem:[#allocation5 + $0x488] sm:$0xff]
        %v407 = vld [vmem:[#allocation5 + $0x490] sm:$0xff]
        %v408 = vld [vmem:[#allocation5 + $0x498] sm:$0xff]
        %v409 = vld [vmem:[#allocation5 + $0x4a0] sm:$0xff]
        %v410 = vld [vmem:[#allocation5 + $0x4a8] sm:$0xff]
        %v411 = vld [vmem:[#allocation5 + $0x4b0] sm:$0xff]
        %v412 = vld [vmem:[#allocation5 + $0x4b8] sm:$0xff]
        %v413 = vld [vmem:[#allocation5 + $0x4c0] sm:$0xff]
        %v414 = vld [vmem:[#allocation5 + $0x4c8] sm:$0xff]
        %v415 = vld [vmem:[#allocation5 + $0x4d0] sm:$0xff]
        %v416 = vld [vmem:[#allocation5 + $0x4d8] sm:$0xff]
        %v417 = vld [vmem:[#allocation5 + $0x4e0] sm:$0xff]
        %v418 = vld [vmem:[#allocation5 + $0x4e8] sm:$0xff]
        %v419 = vld [vmem:[#allocation5 + $0x4f0] sm:$0xff]
        %v420 = vld [vmem:[#allocation5 + $0x4f8] sm:$0xff]
        %v421 = vld [vmem:[%s2] sm:$0xff]
        %v422 = vld [vmem:[%s2 + $0x8] sm:$0x3]
        %v425 = vlaneseq
        %v426 = vshrl.u32 %v425, 7
        %v427 = vsub.s32 0, %v426
        %v428 = vrot.slane %v421, %v427
        %v429 = vlaneseq
        %v430 = vshrl.u32 %v429, 7
        %v431 = vsub.s32 1, %v430
        %v432 = vrot.slane %v421, %v431
        %v433 = vlaneseq
        %v434 = vshrl.u32 %v433, 7
        %v435 = vsub.s32 2, %v434
        %v436 = vrot.slane %v421, %v435
        %v437 = vlaneseq
        %v438 = vshrl.u32 %v437, 7
        %v439 = vsub.s32 3, %v438
        %v440 = vrot.slane %v421, %v439
        %v441 = vlaneseq
        %v442 = vshrl.u32 %v441, 7
        %v443 = vsub.s32 4, %v442
        %v444 = vrot.slane %v421, %v443
        %v445 = vlaneseq
        %v446 = vshrl.u32 %v445, 7
        %v447 = vsub.s32 5, %v446
        %v448 = vrot.slane %v421, %v447
        %v449 = vlaneseq
        %v450 = vshrl.u32 %v449, 7
        %v451 = vsub.s32 6, %v450
        %v452 = vrot.slane %v421, %v451
        %v453 = vlaneseq
        %v454 = vshrl.u32 %v453, 7
        %v455 = vsub.s32 7, %v454
        %v456 = vrot.slane %v421, %v455
        %v457 = vlaneseq
        %v458 = vshrl.u32 %v457, 7
        %v459 = vsub.s32 0, %v458
        %v460 = vrot.slane %v422, %v459
        %v461 = vlaneseq
        %v462 = vshrl.u32 %v461, 7
        %v463 = vsub.s32 1, %v462
        %v464 = vrot.slane %v422, %v463
        %v635 = vunpack.c.l.b16 %v261
        %v636 = vunpack.c.h.b16 %v261
        %v637 = vunpack.c.l.b16 %v262
        %v638 = vunpack.c.h.b16 %v262
        %v639 = vunpack.c.l.b16 %v263
        %v640 = vunpack.c.h.b16 %v263
        %v641 = vunpack.c.l.b16 %v264
        %v642 = vunpack.c.h.b16 %v264
        %v643 = vunpack.c.l.b16 %v265
        %v644 = vunpack.c.h.b16 %v265
        %v645 = vunpack.c.l.b16 %v266
        %v646 = vunpack.c.h.b16 %v266
        %v647 = vunpack.c.l.b16 %v267
        %v648 = vunpack.c.h.b16 %v267
        %v649 = vunpack.c.l.b16 %v268
        %v650 = vunpack.c.h.b16 %v268
        %v651 = vunpack.c.l.b16 %v269
        %v652 = vunpack.c.h.b16 %v269
        %v653 = vunpack.c.l.b16 %v270
        %v654 = vunpack.c.h.b16 %v270
        %v655 = vunpack.c.l.b16 %v271
        %v656 = vunpack.c.h.b16 %v271
        %v657 = vunpack.c.l.b16 %v272
        %v658 = vunpack.c.h.b16 %v272
        %v659 = vunpack.c.l.b16 %v273
        %v660 = vunpack.c.h.b16 %v273
        %v661 = vunpack.c.l.b16 %v274
        %v662 = vunpack.c.h.b16 %v274
        %v663 = vunpack.c.l.b16 %v275
        %v664 = vunpack.c.h.b16 %v275
        %v665 = vunpack.c.l.b16 %v276
        %v666 = vunpack.c.h.b16 %v276
        %v667 = vunpack.c.l.b16 %v277
        %v668 = vunpack.c.h.b16 %v277
        %v669 = vunpack.c.l.b16 %v278
        %v670 = vunpack.c.h.b16 %v278
        %v671 = vunpack.c.l.b16 %v279
        %v672 = vunpack.c.h.b16 %v279
        %v673 = vunpack.c.l.b16 %v280
        %v674 = vunpack.c.h.b16 %v280
        %v675 = vunpack.c.l.b16 %v281
        %v676 = vunpack.c.h.b16 %v281
        %v677 = vunpack.c.l.b16 %v282
        %v678 = vunpack.c.h.b16 %v282
        %v679 = vunpack.c.l.b16 %v283
        %v680 = vunpack.c.h.b16 %v283
        %v681 = vunpack.c.l.b16 %v284
        %v682 = vunpack.c.h.b16 %v284
        %v683 = vunpack.c.l.b16 %v285
        %v684 = vunpack.c.h.b16 %v285
        %v685 = vunpack.c.l.b16 %v286
        %v686 = vunpack.c.h.b16 %v286
        %v687 = vunpack.c.l.b16 %v287
        %v688 = vunpack.c.h.b16 %v287
        %v689 = vunpack.c.l.b16 %v288
        %v690 = vunpack.c.h.b16 %v288
        %v691 = vunpack.c.l.b16 %v289
        %v692 = vunpack.c.h.b16 %v289
        %v693 = vunpack.c.l.b16 %v290
        %v694 = vunpack.c.h.b16 %v290
        %v695 = vunpack.c.l.b16 %v291
        %v696 = vunpack.c.h.b16 %v291
        %v697 = vunpack.c.l.b16 %v292
        %v698 = vunpack.c.h.b16 %v292
        %v699 = vunpack.c.l.b16 %v293
        %v700 = vunpack.c.h.b16 %v293
        %v701 = vunpack.c.l.b16 %v294
        %v702 = vunpack.c.h.b16 %v294
        %v703 = vunpack.c.l.b16 %v295
        %v704 = vunpack.c.h.b16 %v295
        %v705 = vunpack.c.l.b16 %v296
        %v706 = vunpack.c.h.b16 %v296
        %v707 = vunpack.c.l.b16 %v297
        %v708 = vunpack.c.h.b16 %v297
        %v709 = vunpack.c.l.b16 %v298
        %v710 = vunpack.c.h.b16 %v298
        %v711 = vunpack.c.l.b16 %v299
        %v712 = vunpack.c.h.b16 %v299
        %v713 = vunpack.c.l.b16 %v300
        %v714 = vunpack.c.h.b16 %v300
        %v715 = vunpack.c.l.b16 %v301
        %v716 = vunpack.c.h.b16 %v301
        %v717 = vunpack.c.l.b16 %v302
        %v718 = vunpack.c.h.b16 %v302
        %v719 = vunpack.c.l.b16 %v303
        %v720 = vunpack.c.h.b16 %v303
        %v721 = vunpack.c.l.b16 %v304
        %v722 = vunpack.c.h.b16 %v304
        %v723 = vunpack.c.l.b16 %v305
        %v724 = vunpack.c.h.b16 %v305
        %v725 = vunpack.c.l.b16 %v306
        %v726 = vunpack.c.h.b16 %v306
        %v727 = vunpack.c.l.b16 %v307
        %v728 = vunpack.c.h.b16 %v307
        %v729 = vunpack.c.l.b16 %v308
        %v730 = vunpack.c.h.b16 %v308
        %v731 = vunpack.c.l.b16 %v309
        %v732 = vunpack.c.h.b16 %v309
        %v733 = vunpack.c.l.b16 %v310
        %v734 = vunpack.c.h.b16 %v310
        %v735 = vunpack.c.l.b16 %v311
        %v736 = vunpack.c.h.b16 %v311
        %v737 = vunpack.c.l.b16 %v312
        %v738 = vunpack.c.h.b16 %v312
        %v739 = vunpack.c.l.b16 %v313
        %v740 = vunpack.c.h.b16 %v313
        %v741 = vunpack.c.l.b16 %v314
        %v742 = vunpack.c.h.b16 %v314
        %v743 = vunpack.c.l.b16 %v315
        %v744 = vunpack.c.h.b16 %v315
        %v745 = vunpack.c.l.b16 %v316
        %v746 = vunpack.c.h.b16 %v316
        %v747 = vunpack.c.l.b16 %v317
        %v748 = vunpack.c.h.b16 %v317
        %v749 = vunpack.c.l.b16 %v318
        %v750 = vunpack.c.h.b16 %v318
        %v751 = vunpack.c.l.b16 %v319
        %v752 = vunpack.c.h.b16 %v319
        %v753 = vunpack.c.l.b16 %v320
        %v754 = vunpack.c.h.b16 %v320
        %v755 = vunpack.c.l.b16 %v321
        %v756 = vunpack.c.h.b16 %v321
        %v757 = vunpack.c.l.b16 %v322
        %v758 = vunpack.c.h.b16 %v322
        %v759 = vunpack.c.l.b16 %v323
        %v760 = vunpack.c.h.b16 %v323
        %v761 = vunpack.c.l.b16 %v324
        %v762 = vunpack.c.h.b16 %v324
        %v763 = vunpack.c.l.b16 %v325
        %v764 = vunpack.c.h.b16 %v325
        %v765 = vunpack.c.l.b16 %v326
        %v766 = vunpack.c.h.b16 %v326
        %v767 = vunpack.c.l.b16 %v327
        %v768 = vunpack.c.h.b16 %v327
        %v769 = vunpack.c.l.b16 %v328
        %v770 = vunpack.c.h.b16 %v328
        %v771 = vunpack.c.l.b16 %v329
        %v772 = vunpack.c.h.b16 %v329
        %v773 = vunpack.c.l.b16 %v330
        %v774 = vunpack.c.h.b16 %v330
        %v775 = vunpack.c.l.b16 %v331
        %v776 = vunpack.c.h.b16 %v331
        %v777 = vunpack.c.l.b16 %v332
        %v778 = vunpack.c.h.b16 %v332
        %v779 = vunpack.c.l.b16 %v333
        %v780 = vunpack.c.h.b16 %v333
        %v781 = vunpack.c.l.b16 %v334
        %v782 = vunpack.c.h.b16 %v334
        %v783 = vunpack.c.l.b16 %v335
        %v784 = vunpack.c.h.b16 %v335
        %v785 = vunpack.c.l.b16 %v336
        %v786 = vunpack.c.h.b16 %v336
        %v787 = vunpack.c.l.b16 %v337
        %v788 = vunpack.c.h.b16 %v337
        %v789 = vunpack.c.l.b16 %v338
        %v790 = vunpack.c.h.b16 %v338
        %v791 = vunpack.c.l.b16 %v339
        %v792 = vunpack.c.h.b16 %v339
        %v793 = vunpack.c.l.b16 %v340
        %v794 = vunpack.c.h.b16 %v340
        %v795 = vunpack.c.l.b16 %v341
        %v796 = vunpack.c.h.b16 %v341
        %v797 = vunpack.c.l.b16 %v342
        %v798 = vunpack.c.h.b16 %v342
        %v799 = vunpack.c.l.b16 %v343
        %v800 = vunpack.c.h.b16 %v343
        %v801 = vunpack.c.l.b16 %v344
        %v802 = vunpack.c.h.b16 %v344
        %v803 = vunpack.c.l.b16 %v345
        %v804 = vunpack.c.h.b16 %v345
        %v805 = vunpack.c.l.b16 %v346
        %v806 = vunpack.c.h.b16 %v346
        %v807 = vunpack.c.l.b16 %v347
        %v808 = vunpack.c.h.b16 %v347
        %v809 = vunpack.c.l.b16 %v348
        %v810 = vunpack.c.h.b16 %v348
        %v811 = vunpack.c.l.b16 %v349
        %v812 = vunpack.c.h.b16 %v349
        %v813 = vunpack.c.l.b16 %v350
        %v814 = vunpack.c.h.b16 %v350
        %v815 = vunpack.c.l.b16 %v351
        %v816 = vunpack.c.h.b16 %v351
        %v817 = vunpack.c.l.b16 %v352
        %v818 = vunpack.c.h.b16 %v352
        %v819 = vunpack.c.l.b16 %v353
        %v820 = vunpack.c.h.b16 %v353
        %v821 = vunpack.c.l.b16 %v354
        %v822 = vunpack.c.h.b16 %v354
        %v823 = vunpack.c.l.b16 %v355
        %v824 = vunpack.c.h.b16 %v355
        %v825 = vunpack.c.l.b16 %v356
        %v826 = vunpack.c.h.b16 %v356
        %v827 = vunpack.c.l.b16 %v357
        %v828 = vunpack.c.h.b16 %v357
        %v829 = vunpack.c.l.b16 %v358
        %v830 = vunpack.c.h.b16 %v358
        %v831 = vunpack.c.l.b16 %v359
        %v832 = vunpack.c.h.b16 %v359
        %v833 = vunpack.c.l.b16 %v360
        %v834 = vunpack.c.h.b16 %v360
        %v835 = vunpack.c.l.b16 %v361
        %v836 = vunpack.c.h.b16 %v361
        %v837 = vunpack.c.l.b16 %v362
        %v838 = vunpack.c.h.b16 %v362
        %v839 = vunpack.c.l.b16 %v363
        %v840 = vunpack.c.h.b16 %v363
        %v841 = vunpack.c.l.b16 %v364
        %v842 = vunpack.c.h.b16 %v364
        %v843 = vunpack.c.l.b16 %v365
        %v844 = vunpack.c.h.b16 %v365
        %v845 = vunpack.c.l.b16 %v366
        %v846 = vunpack.c.h.b16 %v366
        %v847 = vunpack.c.l.b16 %v367
        %v848 = vunpack.c.h.b16 %v367
        %v849 = vunpack.c.l.b16 %v368
        %v850 = vunpack.c.h.b16 %v368
        %v851 = vunpack.c.l.b16 %v369
        %v852 = vunpack.c.h.b16 %v369
        %v853 = vunpack.c.l.b16 %v370
        %v854 = vunpack.c.h.b16 %v370
        %v855 = vunpack.c.l.b16 %v371
        %v856 = vunpack.c.h.b16 %v371
        %v857 = vunpack.c.l.b16 %v372
        %v858 = vunpack.c.h.b16 %v372
        %v859 = vunpack.c.l.b16 %v373
        %v860 = vunpack.c.h.b16 %v373
        %v861 = vunpack.c.l.b16 %v374
        %v862 = vunpack.c.h.b16 %v374
        %v863 = vunpack.c.l.b16 %v375
        %v864 = vunpack.c.h.b16 %v375
        %v865 = vunpack.c.l.b16 %v376
        %v866 = vunpack.c.h.b16 %v376
        %v867 = vunpack.c.l.b16 %v377
        %v868 = vunpack.c.h.b16 %v377
        %v869 = vunpack.c.l.b16 %v378
        %v870 = vunpack.c.h.b16 %v378
        %v871 = vunpack.c.l.b16 %v379
        %v872 = vunpack.c.h.b16 %v379
        %v873 = vunpack.c.l.b16 %v380
        %v874 = vunpack.c.h.b16 %v380
        %v875 = vunpack.c.l.b16 %v381
        %v876 = vunpack.c.h.b16 %v381
        %v877 = vunpack.c.l.b16 %v382
        %v878 = vunpack.c.h.b16 %v382
        %v879 = vunpack.c.l.b16 %v383
        %v880 = vunpack.c.h.b16 %v383
        %v881 = vunpack.c.l.b16 %v384
        %v882 = vunpack.c.h.b16 %v384
        %v883 = vunpack.c.l.b16 %v385
        %v884 = vunpack.c.h.b16 %v385
        %v885 = vunpack.c.l.b16 %v386
        %v886 = vunpack.c.h.b16 %v386
        %v887 = vunpack.c.l.b16 %v387
        %v888 = vunpack.c.h.b16 %v387
        %v889 = vunpack.c.l.b16 %v388
        %v890 = vunpack.c.h.b16 %v388
        %v891 = vunpack.c.l.b16 %v389
        %v892 = vunpack.c.h.b16 %v389
        %v893 = vunpack.c.l.b16 %v390
        %v894 = vunpack.c.h.b16 %v390
        %v895 = vunpack.c.l.b16 %v391
        %v896 = vunpack.c.h.b16 %v391
        %v897 = vunpack.c.l.b16 %v392
        %v898 = vunpack.c.h.b16 %v392
        %v899 = vunpack.c.l.b16 %v393
        %v900 = vunpack.c.h.b16 %v393
        %v901 = vunpack.c.l.b16 %v394
        %v902 = vunpack.c.h.b16 %v394
        %v903 = vunpack.c.l.b16 %v395
        %v904 = vunpack.c.h.b16 %v395
        %v905 = vunpack.c.l.b16 %v396
        %v906 = vunpack.c.h.b16 %v396
        %v907 = vunpack.c.l.b16 %v397
        %v908 = vunpack.c.h.b16 %v397
        %v909 = vunpack.c.l.b16 %v398
        %v910 = vunpack.c.h.b16 %v398
        %v911 = vunpack.c.l.b16 %v399
        %v912 = vunpack.c.h.b16 %v399
        %v913 = vunpack.c.l.b16 %v400
        %v914 = vunpack.c.h.b16 %v400
        %v915 = vunpack.c.l.b16 %v401
        %v916 = vunpack.c.h.b16 %v401
        %v917 = vunpack.c.l.b16 %v402
        %v918 = vunpack.c.h.b16 %v402
        %v919 = vunpack.c.l.b16 %v403
        %v920 = vunpack.c.h.b16 %v403
        %v921 = vunpack.c.l.b16 %v404
        %v922 = vunpack.c.h.b16 %v404
        %v923 = vunpack.c.l.b16 %v405
        %v924 = vunpack.c.h.b16 %v405
        %v925 = vunpack.c.l.b16 %v406
        %v926 = vunpack.c.h.b16 %v406
        %v927 = vunpack.c.l.b16 %v407
        %v928 = vunpack.c.h.b16 %v407
        %v929 = vunpack.c.l.b16 %v408
        %v930 = vunpack.c.h.b16 %v408
        %v931 = vunpack.c.l.b16 %v409
        %v932 = vunpack.c.h.b16 %v409
        %v933 = vunpack.c.l.b16 %v410
        %v934 = vunpack.c.h.b16 %v410
        %v935 = vunpack.c.l.b16 %v411
        %v936 = vunpack.c.h.b16 %v411
        %v937 = vunpack.c.l.b16 %v412
        %v938 = vunpack.c.h.b16 %v412
        %v939 = vunpack.c.l.b16 %v413
        %v940 = vunpack.c.h.b16 %v413
        %v941 = vunpack.c.l.b16 %v414
        %v942 = vunpack.c.h.b16 %v414
        %v943 = vunpack.c.l.b16 %v415
        %v944 = vunpack.c.h.b16 %v415
        %v945 = vunpack.c.l.b16 %v416
        %v946 = vunpack.c.h.b16 %v416
        %v947 = vunpack.c.l.b16 %v417
        %v948 = vunpack.c.h.b16 %v417
        %v949 = vunpack.c.l.b16 %v418
        %v950 = vunpack.c.h.b16 %v418
        %v951 = vunpack.c.l.b16 %v419
        %v952 = vunpack.c.h.b16 %v419
        %v953 = vunpack.c.l.b16 %v420
        %v954 = vunpack.c.h.b16 %v420
        %v955 = vpack.c.b16 %v645, %v635
        %v956 = vpack.c.b16 %v646, %v636
        %v957 = vpack.c.b16 %v647, %v637
        %v958 = vpack.c.b16 %v648, %v638
        %v959 = vpack.c.b16 %v649, %v639
        %v960 = vpack.c.b16 %v650, %v640
        %v961 = vpack.c.b16 %v651, %v641
        %v962 = vpack.c.b16 %v652, %v642
        %v963 = vpack.c.b16 %v653, %v643
        %v964 = vpack.c.b16 %v654, %v644
        %v965 = vpack.c.b16 %v665, %v655
        %v966 = vpack.c.b16 %v666, %v656
        %v967 = vpack.c.b16 %v667, %v657
        %v968 = vpack.c.b16 %v668, %v658
        %v969 = vpack.c.b16 %v669, %v659
        %v970 = vpack.c.b16 %v670, %v660
        %v971 = vpack.c.b16 %v671, %v661
        %v972 = vpack.c.b16 %v672, %v662
        %v973 = vpack.c.b16 %v673, %v663
        %v974 = vpack.c.b16 %v674, %v664
        %v975 = vpack.c.b16 %v685, %v675
        %v976 = vpack.c.b16 %v686, %v676
        %v977 = vpack.c.b16 %v687, %v677
        %v978 = vpack.c.b16 %v688, %v678
        %v979 = vpack.c.b16 %v689, %v679
        %v980 = vpack.c.b16 %v690, %v680
        %v981 = vpack.c.b16 %v691, %v681
        %v982 = vpack.c.b16 %v692, %v682
        %v983 = vpack.c.b16 %v693, %v683
        %v984 = vpack.c.b16 %v694, %v684
        %v985 = vpack.c.b16 %v705, %v695
        %v986 = vpack.c.b16 %v706, %v696
        %v987 = vpack.c.b16 %v707, %v697
        %v988 = vpack.c.b16 %v708, %v698
        %v989 = vpack.c.b16 %v709, %v699
        %v990 = vpack.c.b16 %v710, %v700
        %v991 = vpack.c.b16 %v711, %v701
        %v992 = vpack.c.b16 %v712, %v702
        %v993 = vpack.c.b16 %v713, %v703
        %v994 = vpack.c.b16 %v714, %v704
        %v995 = vpack.c.b16 %v725, %v715
        %v996 = vpack.c.b16 %v726, %v716
        %v997 = vpack.c.b16 %v727, %v717
        %v998 = vpack.c.b16 %v728, %v718
        %v999 = vpack.c.b16 %v729, %v719
        %v1000 = vpack.c.b16 %v730, %v720
        %v1001 = vpack.c.b16 %v731, %v721
        %v1002 = vpack.c.b16 %v732, %v722
        %v1003 = vpack.c.b16 %v733, %v723
        %v1004 = vpack.c.b16 %v734, %v724
        %v1005 = vpack.c.b16 %v745, %v735
        %v1006 = vpack.c.b16 %v746, %v736
        %v1007 = vpack.c.b16 %v747, %v737
        %v1008 = vpack.c.b16 %v748, %v738
        %v1009 = vpack.c.b16 %v749, %v739
        %v1010 = vpack.c.b16 %v750, %v740
        %v1011 = vpack.c.b16 %v751, %v741
        %v1012 = vpack.c.b16 %v752, %v742
        %v1013 = vpack.c.b16 %v753, %v743
        %v1014 = vpack.c.b16 %v754, %v744
        %v1015 = vpack.c.b16 %v765, %v755
        %v1016 = vpack.c.b16 %v766, %v756
        %v1017 = vpack.c.b16 %v767, %v757
        %v1018 = vpack.c.b16 %v768, %v758
        %v1019 = vpack.c.b16 %v769, %v759
        %v1020 = vpack.c.b16 %v770, %v760
        %v1021 = vpack.c.b16 %v771, %v761
        %v1022 = vpack.c.b16 %v772, %v762
        %v1023 = vpack.c.b16 %v773, %v763
        %v1024 = vpack.c.b16 %v774, %v764
        %v1025 = vpack.c.b16 %v785, %v775
        %v1026 = vpack.c.b16 %v786, %v776
        %v1027 = vpack.c.b16 %v787, %v777
        %v1028 = vpack.c.b16 %v788, %v778
        %v1029 = vpack.c.b16 %v789, %v779
        %v1030 = vpack.c.b16 %v790, %v780
        %v1031 = vpack.c.b16 %v791, %v781
        %v1032 = vpack.c.b16 %v792, %v782
        %v1033 = vpack.c.b16 %v793, %v783
        %v1034 = vpack.c.b16 %v794, %v784
        %v1035 = vpack.c.b16 %v805, %v795
        %v1036 = vpack.c.b16 %v806, %v796
        %v1037 = vpack.c.b16 %v807, %v797
        %v1038 = vpack.c.b16 %v808, %v798
        %v1039 = vpack.c.b16 %v809, %v799
        %v1040 = vpack.c.b16 %v810, %v800
        %v1041 = vpack.c.b16 %v811, %v801
        %v1042 = vpack.c.b16 %v812, %v802
        %v1043 = vpack.c.b16 %v813, %v803
        %v1044 = vpack.c.b16 %v814, %v804
        %v1045 = vpack.c.b16 %v825, %v815
        %v1046 = vpack.c.b16 %v826, %v816
        %v1047 = vpack.c.b16 %v827, %v817
        %v1048 = vpack.c.b16 %v828, %v818
        %v1049 = vpack.c.b16 %v829, %v819
        %v1050 = vpack.c.b16 %v830, %v820
        %v1051 = vpack.c.b16 %v831, %v821
        %v1052 = vpack.c.b16 %v832, %v822
        %v1053 = vpack.c.b16 %v833, %v823
        %v1054 = vpack.c.b16 %v834, %v824
        %v1055 = vpack.c.b16 %v845, %v835
        %v1056 = vpack.c.b16 %v846, %v836
        %v1057 = vpack.c.b16 %v847, %v837
        %v1058 = vpack.c.b16 %v848, %v838
        %v1059 = vpack.c.b16 %v849, %v839
        %v1060 = vpack.c.b16 %v850, %v840
        %v1061 = vpack.c.b16 %v851, %v841
        %v1062 = vpack.c.b16 %v852, %v842
        %v1063 = vpack.c.b16 %v853, %v843
        %v1064 = vpack.c.b16 %v854, %v844
        %v1065 = vpack.c.b16 %v865, %v855
        %v1066 = vpack.c.b16 %v866, %v856
        %v1067 = vpack.c.b16 %v867, %v857
        %v1068 = vpack.c.b16 %v868, %v858
        %v1069 = vpack.c.b16 %v869, %v859
        %v1070 = vpack.c.b16 %v870, %v860
        %v1071 = vpack.c.b16 %v871, %v861
        %v1072 = vpack.c.b16 %v872, %v862
        %v1073 = vpack.c.b16 %v873, %v863
        %v1074 = vpack.c.b16 %v874, %v864
        %v1075 = vpack.c.b16 %v885, %v875
        %v1076 = vpack.c.b16 %v886, %v876
        %v1077 = vpack.c.b16 %v887, %v877
        %v1078 = vpack.c.b16 %v888, %v878
        %v1079 = vpack.c.b16 %v889, %v879
        %v1080 = vpack.c.b16 %v890, %v880
        %v1081 = vpack.c.b16 %v891, %v881
        %v1082 = vpack.c.b16 %v892, %v882
        %v1083 = vpack.c.b16 %v893, %v883
        %v1084 = vpack.c.b16 %v894, %v884
        %v1085 = vpack.c.b16 %v905, %v895
        %v1086 = vpack.c.b16 %v906, %v896
        %v1087 = vpack.c.b16 %v907, %v897
        %v1088 = vpack.c.b16 %v908, %v898
        %v1089 = vpack.c.b16 %v909, %v899
        %v1090 = vpack.c.b16 %v910, %v900
        %v1091 = vpack.c.b16 %v911, %v901
        %v1092 = vpack.c.b16 %v912, %v902
        %v1093 = vpack.c.b16 %v913, %v903
        %v1094 = vpack.c.b16 %v914, %v904
        %v1095 = vpack.c.b16 %v925, %v915
        %v1096 = vpack.c.b16 %v926, %v916
        %v1097 = vpack.c.b16 %v927, %v917
        %v1098 = vpack.c.b16 %v928, %v918
        %v1099 = vpack.c.b16 %v929, %v919
        %v1100 = vpack.c.b16 %v930, %v920
        %v1101 = vpack.c.b16 %v931, %v921
        %v1102 = vpack.c.b16 %v932, %v922
        %v1103 = vpack.c.b16 %v933, %v923
        %v1104 = vpack.c.b16 %v934, %v924
        %v1105 = vpack.c.b16 %v945, %v935
        %v1106 = vpack.c.b16 %v946, %v936
        %v1107 = vpack.c.b16 %v947, %v937
        %v1108 = vpack.c.b16 %v948, %v938
        %v1109 = vpack.c.b16 %v949, %v939
        %v1110 = vpack.c.b16 %v950, %v940
        %v1111 = vpack.c.b16 %v951, %v941
        %v1112 = vpack.c.b16 %v952, %v942
        %v1113 = vpack.c.b16 %v953, %v943
        %v1114 = vpack.c.b16 %v954, %v944
        %1275 = vmatprep.subr.bf16.mxu0 %v1026
        %1276 = vmatpush1.bf16.msra.mxu0 %v1025
        %1277 = vmatprep.subr.bf16.mxu0 %v1016
        %1278 = vmatpush1.bf16.msra.mxu0 %v1015
        %1279 = vmatprep.subr.bf16.mxu0 %v1006
        %1280 = vmatpush1.bf16.msra.mxu0 %v1005
        %1281 = vmatprep.subr.bf16.mxu0 %v996
        %1282 = vmatpush1.bf16.msra.mxu0 %v995
        %1283 = vmatprep.subr.bf16.mxu0 %v986
        %1284 = vmatpush1.bf16.msra.mxu0 %v985
        %1285 = vmatprep.subr.bf16.mxu0 %v976
        %1286 = vmatpush1.bf16.msra.mxu0 %v975
        %1287 = vmatprep.subr.bf16.mxu0 %v966
        %1288 = vmatpush1.bf16.msra.mxu0 %v965
        %1289 = vmatprep.subr.bf16.mxu0 %v956
        %1290 = vmatpush1.bf16.msra.mxu0 %v955
        %1291 = vmatprep.subr.bf16.mxu0 %v1106
        %1292 = vmatpush2.bf16.msra.mxu0 %v1105
        %1293 = vmatprep.subr.bf16.mxu0 %v1096
        %1294 = vmatpush2.bf16.msra.mxu0 %v1095
        %1295 = vmatprep.subr.bf16.mxu0 %v1086
        %1296 = vmatpush2.bf16.msra.mxu0 %v1085
        %1297 = vmatprep.subr.bf16.mxu0 %v1076
        %1298 = vmatpush2.bf16.msra.mxu0 %v1075
        %1299 = vmatprep.subr.bf16.mxu0 %v1066
        %1300 = vmatpush2.bf16.msra.mxu0 %v1065
        %1301 = vmatprep.subr.bf16.mxu0 %v1056
        %1302 = vmatpush2.bf16.msra.mxu0 %v1055
        %1303 = vmatprep.subr.bf16.mxu0 %v1046
        %1304 = vmatpush2.bf16.msra.mxu0 %v1045
        %1305 = vmatprep.subr.bf16.mxu0 %v1036
        %1306 = vmatpush2.bf16.msra.mxu0 %v1035
        %1307 = vmatprep.mubr.bf16.mxu0 %v260
        %1308 = vmatmul.mubr.bf16.gmra.mxu0 %v259
        %v1309 = vpop.f32.mrf.mxu0
        %v1310 = vadd.f32 %v428, %v1309
        %v1311 = vpop.f32.mrf.mxu0
        %v1312 = vadd.f32 %v432, %v1311
        %v1313 = vpop.f32.mrf.mxu0
        %v1314 = vpop.f32.mrf.mxu0
        %1315 = vdwg.mxu0
        %1316 = vmatprep.subr.bf16.mxu0 %v1028
        %1317 = vmatpush1.bf16.msra.mxu0 %v1027
        %1318 = vmatprep.subr.bf16.mxu0 %v1018
        %1319 = vmatpush1.bf16.msra.mxu0 %v1017
        %1320 = vmatprep.subr.bf16.mxu0 %v1008
        %1321 = vmatpush1.bf16.msra.mxu0 %v1007
        %1322 = vmatprep.subr.bf16.mxu0 %v998
        %1323 = vmatpush1.bf16.msra.mxu0 %v997
        %1324 = vmatprep.subr.bf16.mxu0 %v988
        %1325 = vmatpush1.bf16.msra.mxu0 %v987
        %1326 = vmatprep.subr.bf16.mxu0 %v978
        %1327 = vmatpush1.bf16.msra.mxu0 %v977
        %1328 = vmatprep.subr.bf16.mxu0 %v968
        %1329 = vmatpush1.bf16.msra.mxu0 %v967
        %1330 = vmatprep.subr.bf16.mxu0 %v958
        %1331 = vmatpush1.bf16.msra.mxu0 %v957
        %1332 = vmatprep.subr.bf16.mxu0 %v1108
        %1333 = vmatpush2.bf16.msra.mxu0 %v1107
        %1334 = vmatprep.subr.bf16.mxu0 %v1098
        %1335 = vmatpush2.bf16.msra.mxu0 %v1097
        %1336 = vmatprep.subr.bf16.mxu0 %v1088
        %1337 = vmatpush2.bf16.msra.mxu0 %v1087
        %1338 = vmatprep.subr.bf16.mxu0 %v1078
        %1339 = vmatpush2.bf16.msra.mxu0 %v1077
        %1340 = vmatprep.subr.bf16.mxu0 %v1068
        %1341 = vmatpush2.bf16.msra.mxu0 %v1067
        %1342 = vmatprep.subr.bf16.mxu0 %v1058
        %1343 = vmatpush2.bf16.msra.mxu0 %v1057
        %1344 = vmatprep.subr.bf16.mxu0 %v1048
        %1345 = vmatpush2.bf16.msra.mxu0 %v1047
        %1346 = vmatprep.subr.bf16.mxu0 %v1038
        %1347 = vmatpush2.bf16.msra.mxu0 %v1037
        %1348 = vmatprep.mubr.bf16.mxu0 %v260
        %1349 = vmatmul.mubr.bf16.gmra.mxu0 %v259
        %v1350 = vpop.f32.mrf.mxu0
        %v1351 = vadd.f32 %v436, %v1350
        %v1352 = vpop.f32.mrf.mxu0
        %v1353 = vadd.f32 %v440, %v1352
        %v1354 = vpop.f32.mrf.mxu0
        %v1355 = vpop.f32.mrf.mxu0
        %1356 = vdwg.mxu0
        %1357 = vmatprep.subr.bf16.mxu0 %v1030
        %1358 = vmatpush1.bf16.msra.mxu0 %v1029
        %1359 = vmatprep.subr.bf16.mxu0 %v1020
        %1360 = vmatpush1.bf16.msra.mxu0 %v1019
        %1361 = vmatprep.subr.bf16.mxu0 %v1010
        %1362 = vmatpush1.bf16.msra.mxu0 %v1009
        %1363 = vmatprep.subr.bf16.mxu0 %v1000
        %1364 = vmatpush1.bf16.msra.mxu0 %v999
        %1365 = vmatprep.subr.bf16.mxu0 %v990
        %1366 = vmatpush1.bf16.msra.mxu0 %v989
        %1367 = vmatprep.subr.bf16.mxu0 %v980
        %1368 = vmatpush1.bf16.msra.mxu0 %v979
        %1369 = vmatprep.subr.bf16.mxu0 %v970
        %1370 = vmatpush1.bf16.msra.mxu0 %v969
        %1371 = vmatprep.subr.bf16.mxu0 %v960
        %1372 = vmatpush1.bf16.msra.mxu0 %v959
        %1373 = vmatprep.subr.bf16.mxu0 %v1110
        %1374 = vmatpush2.bf16.msra.mxu0 %v1109
        %1375 = vmatprep.subr.bf16.mxu0 %v1100
        %1376 = vmatpush2.bf16.msra.mxu0 %v1099
        %1377 = vmatprep.subr.bf16.mxu0 %v1090
        %1378 = vmatpush2.bf16.msra.mxu0 %v1089
        %1379 = vmatprep.subr.bf16.mxu0 %v1080
        %1380 = vmatpush2.bf16.msra.mxu0 %v1079
        %1381 = vmatprep.subr.bf16.mxu0 %v1070
        %1382 = vmatpush2.bf16.msra.mxu0 %v1069
        %1383 = vmatprep.subr.bf16.mxu0 %v1060
        %1384 = vmatpush2.bf16.msra.mxu0 %v1059
        %1385 = vmatprep.subr.bf16.mxu0 %v1050
        %1386 = vmatpush2.bf16.msra.mxu0 %v1049
        %1387 = vmatprep.subr.bf16.mxu0 %v1040
        %1388 = vmatpush2.bf16.msra.mxu0 %v1039
        %1389 = vmatprep.mubr.bf16.mxu0 %v260
        %1390 = vmatmul.mubr.bf16.gmra.mxu0 %v259
        %v1391 = vpop.f32.mrf.mxu0
        %v1392 = vadd.f32 %v444, %v1391
        %v1393 = vpop.f32.mrf.mxu0
        %v1394 = vadd.f32 %v448, %v1393
        %v1395 = vpop.f32.mrf.mxu0
        %v1396 = vpop.f32.mrf.mxu0
        %1397 = vdwg.mxu0
        %1398 = vmatprep.subr.bf16.mxu0 %v1032
        %1399 = vmatpush1.bf16.msra.mxu0 %v1031
        %1400 = vmatprep.subr.bf16.mxu0 %v1022
        %1401 = vmatpush1.bf16.msra.mxu0 %v1021
        %1402 = vmatprep.subr.bf16.mxu0 %v1012
        %1403 = vmatpush1.bf16.msra.mxu0 %v1011
        %1404 = vmatprep.subr.bf16.mxu0 %v1002
        %1405 = vmatpush1.bf16.msra.mxu0 %v1001
        %1406 = vmatprep.subr.bf16.mxu0 %v992
        %1407 = vmatpush1.bf16.msra.mxu0 %v991
        %1408 = vmatprep.subr.bf16.mxu0 %v982
        %1409 = vmatpush1.bf16.msra.mxu0 %v981
        %1410 = vmatprep.subr.bf16.mxu0 %v972
        %1411 = vmatpush1.bf16.msra.mxu0 %v971
        %1412 = vmatprep.subr.bf16.mxu0 %v962
        %1413 = vmatpush1.bf16.msra.mxu0 %v961
        %1414 = vmatprep.subr.bf16.mxu0 %v1112
        %1415 = vmatpush2.bf16.msra.mxu0 %v1111
        %1416 = vmatprep.subr.bf16.mxu0 %v1102
        %1417 = vmatpush2.bf16.msra.mxu0 %v1101
        %1418 = vmatprep.subr.bf16.mxu0 %v1092
        %1419 = vmatpush2.bf16.msra.mxu0 %v1091
        %1420 = vmatprep.subr.bf16.mxu0 %v1082
        %1421 = vmatpush2.bf16.msra.mxu0 %v1081
        %1422 = vmatprep.subr.bf16.mxu0 %v1072
        %1423 = vmatpush2.bf16.msra.mxu0 %v1071
        %1424 = vmatprep.subr.bf16.mxu0 %v1062
        %1425 = vmatpush2.bf16.msra.mxu0 %v1061
        %1426 = vmatprep.subr.bf16.mxu0 %v1052
        %1427 = vmatpush2.bf16.msra.mxu0 %v1051
        %1428 = vmatprep.subr.bf16.mxu0 %v1042
        %1429 = vmatpush2.bf16.msra.mxu0 %v1041
        %1430 = vmatprep.mubr.bf16.mxu0 %v260
        %1431 = vmatmul.mubr.bf16.gmra.mxu0 %v259
        %v1432 = vpop.f32.mrf.mxu0
        %v1433 = vadd.f32 %v452, %v1432
        %v1434 = vpop.f32.mrf.mxu0
        %v1435 = vadd.f32 %v456, %v1434
        %v1436 = vpop.f32.mrf.mxu0
        %v1437 = vpop.f32.mrf.mxu0
        %1438 = vdwg.mxu0
        %1439 = vmatprep.subr.bf16.mxu0 %v1034
        %1440 = vmatpush1.bf16.msra.mxu0 %v1033
        %1441 = vmatprep.subr.bf16.mxu0 %v1024
        %1442 = vmatpush1.bf16.msra.mxu0 %v1023
        %1443 = vmatprep.subr.bf16.mxu0 %v1014
        %1444 = vmatpush1.bf16.msra.mxu0 %v1013
        %1445 = vmatprep.subr.bf16.mxu0 %v1004
        %1446 = vmatpush1.bf16.msra.mxu0 %v1003
        %1447 = vmatprep.subr.bf16.mxu0 %v994
        %1448 = vmatpush1.bf16.msra.mxu0 %v993
        %1449 = vmatprep.subr.bf16.mxu0 %v984
        %1450 = vmatpush1.bf16.msra.mxu0 %v983
        %1451 = vmatprep.subr.bf16.mxu0 %v974
        %1452 = vmatpush1.bf16.msra.mxu0 %v973
        %1453 = vmatprep.subr.bf16.mxu0 %v964
        %1454 = vmatpush1.bf16.msra.mxu0 %v963
        %1455 = vmatprep.subr.bf16.mxu0 %v1114
        %1456 = vmatpush2.bf16.msra.mxu0 %v1113
        %1457 = vmatprep.subr.bf16.mxu0 %v1104
        %1458 = vmatpush2.bf16.msra.mxu0 %v1103
        %1459 = vmatprep.subr.bf16.mxu0 %v1094
        %1460 = vmatpush2.bf16.msra.mxu0 %v1093
        %1461 = vmatprep.subr.bf16.mxu0 %v1084
        %1462 = vmatpush2.bf16.msra.mxu0 %v1083
        %1463 = vmatprep.subr.bf16.mxu0 %v1074
        %1464 = vmatpush2.bf16.msra.mxu0 %v1073
        %1465 = vmatprep.subr.bf16.mxu0 %v1064
        %1466 = vmatpush2.bf16.msra.mxu0 %v1063
        %1467 = vmatprep.subr.bf16.mxu0 %v1054
        %1468 = vmatpush2.bf16.msra.mxu0 %v1053
        %1469 = vmatprep.subr.bf16.mxu0 %v1044
        %1470 = vmatpush2.bf16.msra.mxu0 %v1043
        %1471 = vmatprep.mubr.bf16.mxu0 %v260
        %1472 = vmatmul.mubr.bf16.gmra.mxu0 %v259
        %v1473 = vpop.f32.mrf.mxu0
        %v1474 = vadd.f32 %v460, %v1473
        %v1475 = vpop.f32.mrf.mxu0
        %v1476 = vadd.f32 %v464, %v1475
        %v1477 = vpop.f32.mrf.mxu0
        %v1478 = vpop.f32.mrf.mxu0
        %1479 = vdwg.mxu0
        %v1480 = vld [vmem:[%s3] sm:$0xff]
        %v1481 = vld [vmem:[%s3 + $0x8] sm:$0xff]
        %v1482 = vld [vmem:[%s4] sm:$0xff]
        %v1483 = vld [vmem:[%s4 + $0x8] sm:$0xff]
        %v1484 = vmul.f32 %v1310, %v1480
        %v1485 = vmul.f32 %v1312, %v1481
        %v1486 = vmul.f32 %v1433, %v1482
        %v1487 = vmul.f32 %v1435, %v1483
        %v1488 = vadd.f32 %v1484, %v1486
        %v1489 = vadd.f32 %v1485, %v1487
        %v1490 = vmul.f32 %v1351, %v1480
        %v1491 = vmul.f32 %v1353, %v1481
        %v1492 = vmul.f32 %v1474, %v1482
        %v1493 = vmul.f32 %v1476, %v1483
        %v1494 = vadd.f32 %v1490, %v1492
        %v1495 = vadd.f32 %v1491, %v1493
        %v1496 = vpack.c.bf16 %v1488, %v1488
        %v1497 = vpack.c.bf16 %v1494, %v1494
        %v1498 = vmul.f32 %v1392, %v1392
        %v1499 = vmul.f32 %v1498, %v1392
        %v1500 = vand.u32 2147483647, %v1499
        %vm1501 = vcmask 261120
        %v1502 = vsel %vm1501, %v1500, -inf
        %1503 = vmax.xlane.f32.xlu0 %v1502
        %v1504 = vpop.xlane.xlu0 %1503
        %v1505 = vmax.f32 %v1504, 1e-38
        %v1506 = vrcp.pop %v1505
        %v1507 = vmul.f32 %v1499, %v1506
        %v1509 = vsel %vm1501, %v1496, 0
        %v1512 = vsel %vm1501, %v1497, 0
        %1514 = vmatprep.subr.bf16.mxu0 0
        %1515 = vmatpush1.bf16.xpose.msra.mxu0 0
        %1516 = vmatprep.subr.bf16.mxu0 0
        %1517 = vmatpush1.bf16.xpose.msra.mxu0 0
        %1518 = vmatprep.subr.bf16.mxu0 0
        %1519 = vmatpush1.bf16.xpose.msra.mxu0 0
        %1520 = vmatprep.subr.bf16.mxu0 0
        %1521 = vmatpush1.bf16.xpose.msra.mxu0 0
        %1522 = vmatprep.subr.bf16.mxu0 0
        %1523 = vmatpush1.bf16.xpose.msra.mxu0 0
        %1524 = vmatprep.subr.bf16.mxu0 0
        %1525 = vmatpush1.bf16.xpose.msra.mxu0 0
        %1526 = vmatprep.subr.bf16.mxu0 0
        %1527 = vmatpush1.bf16.xpose.msra.mxu0 0
        %1528 = vmatprep.subr.bf16.mxu0 0
        %1529 = vmatpush1.bf16.xpose.msra.mxu0 %v1512
        %1530 = vmatprep.subr.bf16.mxu0 0
        %1531 = vmatpush2.bf16.xpose.msra.mxu0 0
        %1532 = vmatprep.subr.bf16.mxu0 0
        %1533 = vmatpush2.bf16.xpose.msra.mxu0 0
        %1534 = vmatprep.subr.bf16.mxu0 0
        %1535 = vmatpush2.bf16.xpose.msra.mxu0 0
        %1536 = vmatprep.subr.bf16.mxu0 0
        %1537 = vmatpush2.bf16.xpose.msra.mxu0 0
        %1538 = vmatprep.subr.bf16.mxu0 0
        %1539 = vmatpush2.bf16.xpose.msra.mxu0 0
        %1540 = vmatprep.subr.bf16.mxu0 0
        %1541 = vmatpush2.bf16.xpose.msra.mxu0 0
        %1542 = vmatprep.subr.bf16.mxu0 0
        %1543 = vmatpush2.bf16.xpose.msra.mxu0 0
        %1544 = vmatprep.subr.bf16.mxu0 0
        %1545 = vmatpush2.bf16.xpose.msra.mxu0 0
        %1546 = vmatprep.mubr.bf16.mxu0 0
        %1547 = vmatmul.mubr.bf16.gmra.mxu0 %v1509
        %v1548 = vpop.f32.mrf.mxu0
        %v1549 = vadd.f32 0.0, %v1548
        %v1550 = vpop.f32.mrf.mxu0
        %v1551 = vpop.f32.mrf.mxu0
        %v1552 = vpop.f32.mrf.mxu0
        %1553 = vdwg.mxu0
        %v1554 = vmul.f32 %v1549, %v1549
        %vm1555 = vcmask 64512
        %v1556 = vsel %vm1555, %v1554, 0.0
        %1557 = vadd.xlane.f32.xlu0 %v1556
        %v1558 = vpop.xlane.xlu0 %1557
        %v1559 = vmax.f32 %v1558, 1e-38
        %v1560 = vrcp.pop %v1559
        %v1561 = vmul.f32 %v1554, %v1560
        %v1562 = vpack.c.bf16 %v1561, %v1561
        %v1563 = vpack.c.bf16 %v1507, %v1507
        %v1565 = vsel %vm1555, %v1562, 0
        %vm1567 = vcmask 1043456
        %v1569 = vsel %vm1567, %v1563, 0
        %1571 = vmatprep.subr.bf16.mxu0 0
        %1572 = vmatpush1.bf16.msra.mxu0 0
        %1573 = vmatprep.subr.bf16.mxu0 0
        %1574 = vmatpush1.bf16.msra.mxu0 0
        %1575 = vmatprep.subr.bf16.mxu0 0
        %1576 = vmatpush1.bf16.msra.mxu0 0
        %1577 = vmatprep.subr.bf16.mxu0 0
        %1578 = vmatpush1.bf16.msra.mxu0 0
        %1579 = vmatprep.subr.bf16.mxu0 0
        %1580 = vmatpush1.bf16.msra.mxu0 0
        %1581 = vmatprep.subr.bf16.mxu0 0
        %1582 = vmatpush1.bf16.msra.mxu0 0
        %1583 = vmatprep.subr.bf16.mxu0 0
        %1584 = vmatpush1.bf16.msra.mxu0 0
        %1585 = vmatprep.subr.bf16.mxu0 0
        %1586 = vmatpush1.bf16.msra.mxu0 %v1569
        %1587 = vmatprep.subr.bf16.mxu0 0
        %1588 = vmatpush2.bf16.msra.mxu0 0
        %1589 = vmatprep.subr.bf16.mxu0 0
        %1590 = vmatpush2.bf16.msra.mxu0 0
        %1591 = vmatprep.subr.bf16.mxu0 0
        %1592 = vmatpush2.bf16.msra.mxu0 0
        %1593 = vmatprep.subr.bf16.mxu0 0
        %1594 = vmatpush2.bf16.msra.mxu0 0
        %1595 = vmatprep.subr.bf16.mxu0 0
        %1596 = vmatpush2.bf16.msra.mxu0 0
        %1597 = vmatprep.subr.bf16.mxu0 0
        %1598 = vmatpush2.bf16.msra.mxu0 0
        %1599 = vmatprep.subr.bf16.mxu0 0
        %1600 = vmatpush2.bf16.msra.mxu0 0
        %1601 = vmatprep.subr.bf16.mxu0 0
        %1602 = vmatpush2.bf16.msra.mxu0 0
        %1603 = vmatprep.mubr.bf16.mxu0 0
        %1604 = vmatmul.mubr.bf16.gmra.mxu0 %v1565
        %v1605 = vpop.f32.mrf.mxu0
        %v1606 = vadd.f32 0.0, %v1605
        %v1607 = vpop.f32.mrf.mxu0
        %v1608 = vpop.f32.mrf.mxu0
        %v1609 = vpop.f32.mrf.mxu0
        %1610 = vdwg.mxu0
        %vm1611 = vcmask 523520
        %v1612 = vsel %vm1611, %v1500, -inf
        %1613 = vmax.xlane.f32.xlu0 %v1612
        %v1614 = vpop.xlane.xlu0 %1613
        %v1615 = vmax.f32 %v1614, 1e-38
        %v1616 = vrcp.pop %v1615
        %v1617 = vmul.f32 %v1499, %v1616
        %1619 = vrot.lane.b32.xlu0 %v1496, 96
        %v1620 = vpop.permute.xlu0 %1619
        %1622 = vrot.lane.b32.xlu0 %v1497, 96
        %v1623 = vpop.permute.xlu0 %1622
        %v1625 = vsel %vm1501, %v1620, 0
        %v1628 = vsel %vm1501, %v1623, 0
        %1630 = vmatprep.subr.bf16.mxu0 0
        %1631 = vmatpush1.bf16.xpose.msra.mxu0 0
        %1632 = vmatprep.subr.bf16.mxu0 0
        %1633 = vmatpush1.bf16.xpose.msra.mxu0 0
        %1634 = vmatprep.subr.bf16.mxu0 0
        %1635 = vmatpush1.bf16.xpose.msra.mxu0 0
        %1636 = vmatprep.subr.bf16.mxu0 0
        %1637 = vmatpush1.bf16.xpose.msra.mxu0 0
        %1638 = vmatprep.subr.bf16.mxu0 0
        %1639 = vmatpush1.bf16.xpose.msra.mxu0 0
        %1640 = vmatprep.subr.bf16.mxu0 0
        %1641 = vmatpush1.bf16.xpose.msra.mxu0 0
        %1642 = vmatprep.subr.bf16.mxu0 0
        %1643 = vmatpush1.bf16.xpose.msra.mxu0 0
        %1644 = vmatprep.subr.bf16.mxu0 0
        %1645 = vmatpush1.bf16.xpose.msra.mxu0 %v1628
        %1646 = vmatprep.subr.bf16.mxu0 0
        %1647 = vmatpush2.bf16.xpose.msra.mxu0 0
        %1648 = vmatprep.subr.bf16.mxu0 0
        %1649 = vmatpush2.bf16.xpose.msra.mxu0 0
        %1650 = vmatprep.subr.bf16.mxu0 0
        %1651 = vmatpush2.bf16.xpose.msra.mxu0 0
        %1652 = vmatprep.subr.bf16.mxu0 0
        %1653 = vmatpush2.bf16.xpose.msra.mxu0 0
        %1654 = vmatprep.subr.bf16.mxu0 0
        %1655 = vmatpush2.bf16.xpose.msra.mxu0 0
        %1656 = vmatprep.subr.bf16.mxu0 0
        %1657 = vmatpush2.bf16.xpose.msra.mxu0 0
        %1658 = vmatprep.subr.bf16.mxu0 0
        %1659 = vmatpush2.bf16.xpose.msra.mxu0 0
        %1660 = vmatprep.subr.bf16.mxu0 0
        %1661 = vmatpush2.bf16.xpose.msra.mxu0 0
        %1662 = vmatprep.mubr.bf16.mxu0 0
        %1663 = vmatmul.mubr.bf16.gmra.mxu0 %v1625
        %v1664 = vpop.f32.mrf.mxu0
        %v1665 = vadd.f32 0.0, %v1664
        %v1666 = vpop.f32.mrf.mxu0
        %v1667 = vpop.f32.mrf.mxu0
        %v1668 = vpop.f32.mrf.mxu0
        %1669 = vdwg.mxu0
        %v1670 = vmul.f32 %v1665, %v1665
        %v1671 = vsel %vm1555, %v1670, 0.0
        %1672 = vadd.xlane.f32.xlu0 %v1671
        %v1673 = vpop.xlane.xlu0 %1672
        %v1674 = vmax.f32 %v1673, 1e-38
        %v1675 = vrcp.pop %v1674
        %v1676 = vmul.f32 %v1670, %v1675
        %v1677 = vpack.c.bf16 %v1676, %v1676
        %v1678 = vpack.c.bf16 %v1617, %v1617
        %1680 = vrot.lane.b32.xlu0 %v1678, 96
        %v1681 = vpop.permute.xlu0 %1680
        %v1683 = vsel %vm1555, %v1677, 0
        %v1686 = vsel %vm1567, %v1681, 0
        %1688 = vmatprep.subr.bf16.mxu0 0
        %1689 = vmatpush1.bf16.msra.mxu0 0
        %1690 = vmatprep.subr.bf16.mxu0 0
        %1691 = vmatpush1.bf16.msra.mxu0 0
        %1692 = vmatprep.subr.bf16.mxu0 0
        %1693 = vmatpush1.bf16.msra.mxu0 0
        %1694 = vmatprep.subr.bf16.mxu0 0
        %1695 = vmatpush1.bf16.msra.mxu0 0
        %1696 = vmatprep.subr.bf16.mxu0 0
        %1697 = vmatpush1.bf16.msra.mxu0 0
        %1698 = vmatprep.subr.bf16.mxu0 0
        %1699 = vmatpush1.bf16.msra.mxu0 0
        %1700 = vmatprep.subr.bf16.mxu0 0
        %1701 = vmatpush1.bf16.msra.mxu0 0
        %1702 = vmatprep.subr.bf16.mxu0 0
        %1703 = vmatpush1.bf16.msra.mxu0 %v1686
        %1704 = vmatprep.subr.bf16.mxu0 0
        %1705 = vmatpush2.bf16.msra.mxu0 0
        %1706 = vmatprep.subr.bf16.mxu0 0
        %1707 = vmatpush2.bf16.msra.mxu0 0
        %1708 = vmatprep.subr.bf16.mxu0 0
        %1709 = vmatpush2.bf16.msra.mxu0 0
        %1710 = vmatprep.subr.bf16.mxu0 0
        %1711 = vmatpush2.bf16.msra.mxu0 0
        %1712 = vmatprep.subr.bf16.mxu0 0
        %1713 = vmatpush2.bf16.msra.mxu0 0
        %1714 = vmatprep.subr.bf16.mxu0 0
        %1715 = vmatpush2.bf16.msra.mxu0 0
        %1716 = vmatprep.subr.bf16.mxu0 0
        %1717 = vmatpush2.bf16.msra.mxu0 0
        %1718 = vmatprep.subr.bf16.mxu0 0
        %1719 = vmatpush2.bf16.msra.mxu0 0
        %1720 = vmatprep.mubr.bf16.mxu0 0
        %1721 = vmatmul.mubr.bf16.gmra.mxu0 %v1683
        %v1722 = vpop.f32.mrf.mxu0
        %v1723 = vadd.f32 0.0, %v1722
        %v1724 = vpop.f32.mrf.mxu0
        %v1725 = vpop.f32.mrf.mxu0
        %v1726 = vpop.f32.mrf.mxu0
        %1727 = vdwg.mxu0
        %vm1728 = vcmask 785920
        %v1729 = vsel %vm1728, %v1500, -inf
        %1730 = vmax.xlane.f32.xlu0 %v1729
        %v1731 = vpop.xlane.xlu0 %1730
        %v1732 = vmax.f32 %v1731, 1e-38
        %v1733 = vrcp.pop %v1732
        %v1734 = vmul.f32 %v1499, %v1733
        %1735 = vrot.lane.b32.xlu0 %v1496, 64
        %v1736 = vpop.permute.xlu0 %1735
        %1737 = vrot.lane.b32.xlu0 %v1497, 64
        %v1738 = vpop.permute.xlu0 %1737
        %v1740 = vsel %vm1501, %v1736, 0
        %v1743 = vsel %vm1501, %v1738, 0
        %1745 = vmatprep.subr.bf16.mxu0 0
        %1746 = vmatpush1.bf16.xpose.msra.mxu0 0
        %1747 = vmatprep.subr.bf16.mxu0 0
        %1748 = vmatpush1.bf16.xpose.msra.mxu0 0
        %1749 = vmatprep.subr.bf16.mxu0 0
        %1750 = vmatpush1.bf16.xpose.msra.mxu0 0
        %1751 = vmatprep.subr.bf16.mxu0 0
        %1752 = vmatpush1.bf16.xpose.msra.mxu0 0
        %1753 = vmatprep.subr.bf16.mxu0 0
        %1754 = vmatpush1.bf16.xpose.msra.mxu0 0
        %1755 = vmatprep.subr.bf16.mxu0 0
        %1756 = vmatpush1.bf16.xpose.msra.mxu0 0
        %1757 = vmatprep.subr.bf16.mxu0 0
        %1758 = vmatpush1.bf16.xpose.msra.mxu0 0
        %1759 = vmatprep.subr.bf16.mxu0 0
        %1760 = vmatpush1.bf16.xpose.msra.mxu0 %v1743
        %1761 = vmatprep.subr.bf16.mxu0 0
        %1762 = vmatpush2.bf16.xpose.msra.mxu0 0
        %1763 = vmatprep.subr.bf16.mxu0 0
        %1764 = vmatpush2.bf16.xpose.msra.mxu0 0
        %1765 = vmatprep.subr.bf16.mxu0 0
        %1766 = vmatpush2.bf16.xpose.msra.mxu0 0
        %1767 = vmatprep.subr.bf16.mxu0 0
        %1768 = vmatpush2.bf16.xpose.msra.mxu0 0
        %1769 = vmatprep.subr.bf16.mxu0 0
        %1770 = vmatpush2.bf16.xpose.msra.mxu0 0
        %1771 = vmatprep.subr.bf16.mxu0 0
        %1772 = vmatpush2.bf16.xpose.msra.mxu0 0
        %1773 = vmatprep.subr.bf16.mxu0 0
        %1774 = vmatpush2.bf16.xpose.msra.mxu0 0
        %1775 = vmatprep.subr.bf16.mxu0 0
        %1776 = vmatpush2.bf16.xpose.msra.mxu0 0
        %1777 = vmatprep.mubr.bf16.mxu0 0
        %1778 = vmatmul.mubr.bf16.gmra.mxu0 %v1740
        %v1779 = vpop.f32.mrf.mxu0
        %v1780 = vadd.f32 0.0, %v1779
        %v1781 = vpop.f32.mrf.mxu0
        %v1782 = vpop.f32.mrf.mxu0
        %v1783 = vpop.f32.mrf.mxu0
        %1784 = vdwg.mxu0
        %v1785 = vmul.f32 %v1780, %v1780
        %v1786 = vsel %vm1555, %v1785, 0.0
        %1787 = vadd.xlane.f32.xlu0 %v1786
        %v1788 = vpop.xlane.xlu0 %1787
        %v1789 = vmax.f32 %v1788, 1e-38
        %v1790 = vrcp.pop %v1789
        %v1791 = vmul.f32 %v1785, %v1790
        %v1792 = vpack.c.bf16 %v1791, %v1791
        %v1793 = vpack.c.bf16 %v1734, %v1734
        %1795 = vrot.lane.b32.xlu0 %v1793, 64
        %v1796 = vpop.permute.xlu0 %1795
        %v1798 = vsel %vm1555, %v1792, 0
        %v1801 = vsel %vm1567, %v1796, 0
        %1803 = vmatprep.subr.bf16.mxu0 0
        %1804 = vmatpush1.bf16.msra.mxu0 0
        %1805 = vmatprep.subr.bf16.mxu0 0
        %1806 = vmatpush1.bf16.msra.mxu0 0
        %1807 = vmatprep.subr.bf16.mxu0 0
        %1808 = vmatpush1.bf16.msra.mxu0 0
        %1809 = vmatprep.subr.bf16.mxu0 0
        %1810 = vmatpush1.bf16.msra.mxu0 0
        %1811 = vmatprep.subr.bf16.mxu0 0
        %1812 = vmatpush1.bf16.msra.mxu0 0
        %1813 = vmatprep.subr.bf16.mxu0 0
        %1814 = vmatpush1.bf16.msra.mxu0 0
        %1815 = vmatprep.subr.bf16.mxu0 0
        %1816 = vmatpush1.bf16.msra.mxu0 0
        %1817 = vmatprep.subr.bf16.mxu0 0
        %1818 = vmatpush1.bf16.msra.mxu0 %v1801
        %1819 = vmatprep.subr.bf16.mxu0 0
        %1820 = vmatpush2.bf16.msra.mxu0 0
        %1821 = vmatprep.subr.bf16.mxu0 0
        %1822 = vmatpush2.bf16.msra.mxu0 0
        %1823 = vmatprep.subr.bf16.mxu0 0
        %1824 = vmatpush2.bf16.msra.mxu0 0
        %1825 = vmatprep.subr.bf16.mxu0 0
        %1826 = vmatpush2.bf16.msra.mxu0 0
        %1827 = vmatprep.subr.bf16.mxu0 0
        %1828 = vmatpush2.bf16.msra.mxu0 0
        %1829 = vmatprep.subr.bf16.mxu0 0
        %1830 = vmatpush2.bf16.msra.mxu0 0
        %1831 = vmatprep.subr.bf16.mxu0 0
        %1832 = vmatpush2.bf16.msra.mxu0 0
        %1833 = vmatprep.subr.bf16.mxu0 0
        %1834 = vmatpush2.bf16.msra.mxu0 0
        %1835 = vmatprep.mubr.bf16.mxu0 0
        %1836 = vmatmul.mubr.bf16.gmra.mxu0 %v1798
        %v1837 = vpop.f32.mrf.mxu0
        %v1838 = vadd.f32 0.0, %v1837
        %v1839 = vpop.f32.mrf.mxu0
        %v1840 = vpop.f32.mrf.mxu0
        %v1841 = vpop.f32.mrf.mxu0
        %1842 = vdwg.mxu0
        %vm1843 = vcmask 1048320
        %v1844 = vsel %vm1843, %v1500, -inf
        %1845 = vmax.xlane.f32.xlu0 %v1844
        %v1846 = vpop.xlane.xlu0 %1845
        %v1847 = vmax.f32 %v1846, 1e-38
        %v1848 = vrcp.pop %v1847
        %v1849 = vmul.f32 %v1499, %v1848
        %1850 = vrot.lane.b32.xlu0 %v1496, 32
        %v1851 = vpop.permute.xlu0 %1850
        %1852 = vrot.lane.b32.xlu0 %v1497, 32
        %v1853 = vpop.permute.xlu0 %1852
        %v1855 = vsel %vm1501, %v1851, 0
        %v1858 = vsel %vm1501, %v1853, 0
        %1860 = vmatprep.subr.bf16.mxu0 0
        %1861 = vmatpush1.bf16.xpose.msra.mxu0 0
        %1862 = vmatprep.subr.bf16.mxu0 0
        %1863 = vmatpush1.bf16.xpose.msra.mxu0 0
        %1864 = vmatprep.subr.bf16.mxu0 0
        %1865 = vmatpush1.bf16.xpose.msra.mxu0 0
        %1866 = vmatprep.subr.bf16.mxu0 0
        %1867 = vmatpush1.bf16.xpose.msra.mxu0 0
        %1868 = vmatprep.subr.bf16.mxu0 0
        %1869 = vmatpush1.bf16.xpose.msra.mxu0 0
        %1870 = vmatprep.subr.bf16.mxu0 0
        %1871 = vmatpush1.bf16.xpose.msra.mxu0 0
        %1872 = vmatprep.subr.bf16.mxu0 0
        %1873 = vmatpush1.bf16.xpose.msra.mxu0 0
        %1874 = vmatprep.subr.bf16.mxu0 0
        %1875 = vmatpush1.bf16.xpose.msra.mxu0 %v1858
        %1876 = vmatprep.subr.bf16.mxu0 0
        %1877 = vmatpush2.bf16.xpose.msra.mxu0 0
        %1878 = vmatprep.subr.bf16.mxu0 0
        %1879 = vmatpush2.bf16.xpose.msra.mxu0 0
        %1880 = vmatprep.subr.bf16.mxu0 0
        %1881 = vmatpush2.bf16.xpose.msra.mxu0 0
        %1882 = vmatprep.subr.bf16.mxu0 0
        %1883 = vmatpush2.bf16.xpose.msra.mxu0 0
        %1884 = vmatprep.subr.bf16.mxu0 0
        %1885 = vmatpush2.bf16.xpose.msra.mxu0 0
        %1886 = vmatprep.subr.bf16.mxu0 0
        %1887 = vmatpush2.bf16.xpose.msra.mxu0 0
        %1888 = vmatprep.subr.bf16.mxu0 0
        %1889 = vmatpush2.bf16.xpose.msra.mxu0 0
        %1890 = vmatprep.subr.bf16.mxu0 0
        %1891 = vmatpush2.bf16.xpose.msra.mxu0 0
        %1892 = vmatprep.mubr.bf16.mxu0 0
        %1893 = vmatmul.mubr.bf16.gmra.mxu0 %v1855
        %v1894 = vpop.f32.mrf.mxu0
        %v1895 = vadd.f32 0.0, %v1894
        %v1896 = vpop.f32.mrf.mxu0
        %v1897 = vpop.f32.mrf.mxu0
        %v1898 = vpop.f32.mrf.mxu0
        %1899 = vdwg.mxu0
        %v1900 = vmul.f32 %v1895, %v1895
        %v1901 = vsel %vm1555, %v1900, 0.0
        %1902 = vadd.xlane.f32.xlu0 %v1901
        %v1903 = vpop.xlane.xlu0 %1902
        %v1904 = vmax.f32 %v1903, 1e-38
        %v1905 = vrcp.pop %v1904
        %v1906 = vmul.f32 %v1900, %v1905
        %v1907 = vpack.c.bf16 %v1906, %v1906
        %v1908 = vpack.c.bf16 %v1849, %v1849
        %1910 = vrot.lane.b32.xlu0 %v1908, 32
        %v1911 = vpop.permute.xlu0 %1910
        %v1913 = vsel %vm1555, %v1907, 0
        %v1916 = vsel %vm1567, %v1911, 0
        %1918 = vmatprep.subr.bf16.mxu0 0
        %1919 = vmatpush1.bf16.msra.mxu0 0
        %1920 = vmatprep.subr.bf16.mxu0 0
        %1921 = vmatpush1.bf16.msra.mxu0 0
        %1922 = vmatprep.subr.bf16.mxu0 0
        %1923 = vmatpush1.bf16.msra.mxu0 0
        %1924 = vmatprep.subr.bf16.mxu0 0
        %1925 = vmatpush1.bf16.msra.mxu0 0
        %1926 = vmatprep.subr.bf16.mxu0 0
        %1927 = vmatpush1.bf16.msra.mxu0 0
        %1928 = vmatprep.subr.bf16.mxu0 0
        %1929 = vmatpush1.bf16.msra.mxu0 0
        %1930 = vmatprep.subr.bf16.mxu0 0
        %1931 = vmatpush1.bf16.msra.mxu0 0
        %1932 = vmatprep.subr.bf16.mxu0 0
        %1933 = vmatpush1.bf16.msra.mxu0 %v1916
        %1934 = vmatprep.subr.bf16.mxu0 0
        %1935 = vmatpush2.bf16.msra.mxu0 0
        %1936 = vmatprep.subr.bf16.mxu0 0
        %1937 = vmatpush2.bf16.msra.mxu0 0
        %1938 = vmatprep.subr.bf16.mxu0 0
        %1939 = vmatpush2.bf16.msra.mxu0 0
        %1940 = vmatprep.subr.bf16.mxu0 0
        %1941 = vmatpush2.bf16.msra.mxu0 0
        %1942 = vmatprep.subr.bf16.mxu0 0
        %1943 = vmatpush2.bf16.msra.mxu0 0
        %1944 = vmatprep.subr.bf16.mxu0 0
        %1945 = vmatpush2.bf16.msra.mxu0 0
        %1946 = vmatprep.subr.bf16.mxu0 0
        %1947 = vmatpush2.bf16.msra.mxu0 0
        %1948 = vmatprep.subr.bf16.mxu0 0
        %1949 = vmatpush2.bf16.msra.mxu0 0
        %1950 = vmatprep.mubr.bf16.mxu0 0
        %1951 = vmatmul.mubr.bf16.gmra.mxu0 %v1913
        %v1952 = vpop.f32.mrf.mxu0
        %v1953 = vadd.f32 0.0, %v1952
        %v1954 = vpop.f32.mrf.mxu0
        %v1955 = vpop.f32.mrf.mxu0
        %v1956 = vpop.f32.mrf.mxu0
        %1957 = vdwg.mxu0
        %v1958 = vpack.c.bf16 %v1489, %v1489
        %v1959 = vpack.c.bf16 %v1495, %v1495
        %v1960 = vmul.f32 %v1394, %v1394
        %v1961 = vmul.f32 %v1960, %v1394
        %v1962 = vand.u32 2147483647, %v1961
        %v1963 = vsel %vm1501, %v1962, -inf
        %1964 = vmax.xlane.f32.xlu0 %v1963
        %v1965 = vpop.xlane.xlu0 %1964
        %v1966 = vmax.f32 %v1965, 1e-38
        %v1967 = vrcp.pop %v1966
        %v1968 = vmul.f32 %v1961, %v1967
        %v1970 = vsel %vm1501, %v1958, 0
        %v1973 = vsel %vm1501, %v1959, 0
        %1975 = vmatprep.subr.bf16.mxu0 0
        %1976 = vmatpush1.bf16.xpose.msra.mxu0 0
        %1977 = vmatprep.subr.bf16.mxu0 0
        %1978 = vmatpush1.bf16.xpose.msra.mxu0 0
        %1979 = vmatprep.subr.bf16.mxu0 0
        %1980 = vmatpush1.bf16.xpose.msra.mxu0 0
        %1981 = vmatprep.subr.bf16.mxu0 0
        %1982 = vmatpush1.bf16.xpose.msra.mxu0 0
        %1983 = vmatprep.subr.bf16.mxu0 0
        %1984 = vmatpush1.bf16.xpose.msra.mxu0 0
        %1985 = vmatprep.subr.bf16.mxu0 0
        %1986 = vmatpush1.bf16.xpose.msra.mxu0 0
        %1987 = vmatprep.subr.bf16.mxu0 0
        %1988 = vmatpush1.bf16.xpose.msra.mxu0 0
        %1989 = vmatprep.subr.bf16.mxu0 0
        %1990 = vmatpush1.bf16.xpose.msra.mxu0 %v1973
        %1991 = vmatprep.subr.bf16.mxu0 0
        %1992 = vmatpush2.bf16.xpose.msra.mxu0 0
        %1993 = vmatprep.subr.bf16.mxu0 0
        %1994 = vmatpush2.bf16.xpose.msra.mxu0 0
        %1995 = vmatprep.subr.bf16.mxu0 0
        %1996 = vmatpush2.bf16.xpose.msra.mxu0 0
        %1997 = vmatprep.subr.bf16.mxu0 0
        %1998 = vmatpush2.bf16.xpose.msra.mxu0 0
        %1999 = vmatprep.subr.bf16.mxu0 0
        %2000 = vmatpush2.bf16.xpose.msra.mxu0 0
        %2001 = vmatprep.subr.bf16.mxu0 0
        %2002 = vmatpush2.bf16.xpose.msra.mxu0 0
        %2003 = vmatprep.subr.bf16.mxu0 0
        %2004 = vmatpush2.bf16.xpose.msra.mxu0 0
        %2005 = vmatprep.subr.bf16.mxu0 0
        %2006 = vmatpush2.bf16.xpose.msra.mxu0 0
        %2007 = vmatprep.mubr.bf16.mxu0 0
        %2008 = vmatmul.mubr.bf16.gmra.mxu0 %v1970
        %v2009 = vpop.f32.mrf.mxu0
        %v2010 = vadd.f32 0.0, %v2009
        %v2011 = vpop.f32.mrf.mxu0
        %v2012 = vpop.f32.mrf.mxu0
        %v2013 = vpop.f32.mrf.mxu0
        %2014 = vdwg.mxu0
        %v2015 = vmul.f32 %v2010, %v2010
        %v2016 = vsel %vm1555, %v2015, 0.0
        %2017 = vadd.xlane.f32.xlu0 %v2016
        %v2018 = vpop.xlane.xlu0 %2017
        %v2019 = vmax.f32 %v2018, 1e-38
        %v2020 = vrcp.pop %v2019
        %v2021 = vmul.f32 %v2015, %v2020
        %v2022 = vpack.c.bf16 %v2021, %v2021
        %v2023 = vpack.c.bf16 %v1968, %v1968
        %v2025 = vsel %vm1555, %v2022, 0
        %v2028 = vsel %vm1567, %v2023, 0
        %2030 = vmatprep.subr.bf16.mxu0 0
        %2031 = vmatpush1.bf16.msra.mxu0 0
        %2032 = vmatprep.subr.bf16.mxu0 0
        %2033 = vmatpush1.bf16.msra.mxu0 0
        %2034 = vmatprep.subr.bf16.mxu0 0
        %2035 = vmatpush1.bf16.msra.mxu0 0
        %2036 = vmatprep.subr.bf16.mxu0 0
        %2037 = vmatpush1.bf16.msra.mxu0 0
        %2038 = vmatprep.subr.bf16.mxu0 0
        %2039 = vmatpush1.bf16.msra.mxu0 0
        %2040 = vmatprep.subr.bf16.mxu0 0
        %2041 = vmatpush1.bf16.msra.mxu0 0
        %2042 = vmatprep.subr.bf16.mxu0 0
        %2043 = vmatpush1.bf16.msra.mxu0 0
        %2044 = vmatprep.subr.bf16.mxu0 0
        %2045 = vmatpush1.bf16.msra.mxu0 %v2028
        %2046 = vmatprep.subr.bf16.mxu0 0
        %2047 = vmatpush2.bf16.msra.mxu0 0
        %2048 = vmatprep.subr.bf16.mxu0 0
        %2049 = vmatpush2.bf16.msra.mxu0 0
        %2050 = vmatprep.subr.bf16.mxu0 0
        %2051 = vmatpush2.bf16.msra.mxu0 0
        %2052 = vmatprep.subr.bf16.mxu0 0
        %2053 = vmatpush2.bf16.msra.mxu0 0
        %2054 = vmatprep.subr.bf16.mxu0 0
        %2055 = vmatpush2.bf16.msra.mxu0 0
        %2056 = vmatprep.subr.bf16.mxu0 0
        %2057 = vmatpush2.bf16.msra.mxu0 0
        %2058 = vmatprep.subr.bf16.mxu0 0
        %2059 = vmatpush2.bf16.msra.mxu0 0
        %2060 = vmatprep.subr.bf16.mxu0 0
        %2061 = vmatpush2.bf16.msra.mxu0 0
        %2062 = vmatprep.mubr.bf16.mxu0 0
        %2063 = vmatmul.mubr.bf16.gmra.mxu0 %v2025
        %v2064 = vpop.f32.mrf.mxu0
        %v2065 = vadd.f32 0.0, %v2064
        %v2066 = vpop.f32.mrf.mxu0
        %v2067 = vpop.f32.mrf.mxu0
        %v2068 = vpop.f32.mrf.mxu0
        %2069 = vdwg.mxu0
        %v2070 = vsel %vm1611, %v1962, -inf
        %2071 = vmax.xlane.f32.xlu0 %v2070
        %v2072 = vpop.xlane.xlu0 %2071
        %v2073 = vmax.f32 %v2072, 1e-38
        %v2074 = vrcp.pop %v2073
        %v2075 = vmul.f32 %v1961, %v2074
        %2077 = vrot.lane.b32.xlu0 %v1958, 96
        %v2078 = vpop.permute.xlu0 %2077
        %2080 = vrot.lane.b32.xlu0 %v1959, 96
        %v2081 = vpop.permute.xlu0 %2080
        %v2083 = vsel %vm1501, %v2078, 0
        %v2086 = vsel %vm1501, %v2081, 0
        %2088 = vmatprep.subr.bf16.mxu0 0
        %2089 = vmatpush1.bf16.xpose.msra.mxu0 0
        %2090 = vmatprep.subr.bf16.mxu0 0
        %2091 = vmatpush1.bf16.xpose.msra.mxu0 0
        %2092 = vmatprep.subr.bf16.mxu0 0
        %2093 = vmatpush1.bf16.xpose.msra.mxu0 0
        %2094 = vmatprep.subr.bf16.mxu0 0
        %2095 = vmatpush1.bf16.xpose.msra.mxu0 0
        %2096 = vmatprep.subr.bf16.mxu0 0
        %2097 = vmatpush1.bf16.xpose.msra.mxu0 0
        %2098 = vmatprep.subr.bf16.mxu0 0
        %2099 = vmatpush1.bf16.xpose.msra.mxu0 0
        %2100 = vmatprep.subr.bf16.mxu0 0
        %2101 = vmatpush1.bf16.xpose.msra.mxu0 0
        %2102 = vmatprep.subr.bf16.mxu0 0
        %2103 = vmatpush1.bf16.xpose.msra.mxu0 %v2086
        %2104 = vmatprep.subr.bf16.mxu0 0
        %2105 = vmatpush2.bf16.xpose.msra.mxu0 0
        %2106 = vmatprep.subr.bf16.mxu0 0
        %2107 = vmatpush2.bf16.xpose.msra.mxu0 0
        %2108 = vmatprep.subr.bf16.mxu0 0
        %2109 = vmatpush2.bf16.xpose.msra.mxu0 0
        %2110 = vmatprep.subr.bf16.mxu0 0
        %2111 = vmatpush2.bf16.xpose.msra.mxu0 0
        %2112 = vmatprep.subr.bf16.mxu0 0
        %2113 = vmatpush2.bf16.xpose.msra.mxu0 0
        %2114 = vmatprep.subr.bf16.mxu0 0
        %2115 = vmatpush2.bf16.xpose.msra.mxu0 0
        %2116 = vmatprep.subr.bf16.mxu0 0
        %2117 = vmatpush2.bf16.xpose.msra.mxu0 0
        %2118 = vmatprep.subr.bf16.mxu0 0
        %2119 = vmatpush2.bf16.xpose.msra.mxu0 0
        %2120 = vmatprep.mubr.bf16.mxu0 0
        %2121 = vmatmul.mubr.bf16.gmra.mxu0 %v2083
        %v2122 = vpop.f32.mrf.mxu0
        %v2123 = vadd.f32 0.0, %v2122
        %v2124 = vpop.f32.mrf.mxu0
        %v2125 = vpop.f32.mrf.mxu0
        %v2126 = vpop.f32.mrf.mxu0
        %2127 = vdwg.mxu0
        %v2128 = vmul.f32 %v2123, %v2123
        %v2129 = vsel %vm1555, %v2128, 0.0
        %2130 = vadd.xlane.f32.xlu0 %v2129
        %v2131 = vpop.xlane.xlu0 %2130
        %v2132 = vmax.f32 %v2131, 1e-38
        %v2133 = vrcp.pop %v2132
        %v2134 = vmul.f32 %v2128, %v2133
        %v2135 = vpack.c.bf16 %v2134, %v2134
        %v2136 = vpack.c.bf16 %v2075, %v2075
        %2138 = vrot.lane.b32.xlu0 %v2136, 96
        %v2139 = vpop.permute.xlu0 %2138
        %v2141 = vsel %vm1555, %v2135, 0
        %v2144 = vsel %vm1567, %v2139, 0
        %2146 = vmatprep.subr.bf16.mxu0 0
        %2147 = vmatpush1.bf16.msra.mxu0 0
        %2148 = vmatprep.subr.bf16.mxu0 0
        %2149 = vmatpush1.bf16.msra.mxu0 0
        %2150 = vmatprep.subr.bf16.mxu0 0
        %2151 = vmatpush1.bf16.msra.mxu0 0
        %2152 = vmatprep.subr.bf16.mxu0 0
        %2153 = vmatpush1.bf16.msra.mxu0 0
        %2154 = vmatprep.subr.bf16.mxu0 0
        %2155 = vmatpush1.bf16.msra.mxu0 0
        %2156 = vmatprep.subr.bf16.mxu0 0
        %2157 = vmatpush1.bf16.msra.mxu0 0
        %2158 = vmatprep.subr.bf16.mxu0 0
        %2159 = vmatpush1.bf16.msra.mxu0 0
        %2160 = vmatprep.subr.bf16.mxu0 0
        %2161 = vmatpush1.bf16.msra.mxu0 %v2144
        %2162 = vmatprep.subr.bf16.mxu0 0
        %2163 = vmatpush2.bf16.msra.mxu0 0
        %2164 = vmatprep.subr.bf16.mxu0 0
        %2165 = vmatpush2.bf16.msra.mxu0 0
        %2166 = vmatprep.subr.bf16.mxu0 0
        %2167 = vmatpush2.bf16.msra.mxu0 0
        %2168 = vmatprep.subr.bf16.mxu0 0
        %2169 = vmatpush2.bf16.msra.mxu0 0
        %2170 = vmatprep.subr.bf16.mxu0 0
        %2171 = vmatpush2.bf16.msra.mxu0 0
        %2172 = vmatprep.subr.bf16.mxu0 0
        %2173 = vmatpush2.bf16.msra.mxu0 0
        %2174 = vmatprep.subr.bf16.mxu0 0
        %2175 = vmatpush2.bf16.msra.mxu0 0
        %2176 = vmatprep.subr.bf16.mxu0 0
        %2177 = vmatpush2.bf16.msra.mxu0 0
        %2178 = vmatprep.mubr.bf16.mxu0 0
        %2179 = vmatmul.mubr.bf16.gmra.mxu0 %v2141
        %v2180 = vpop.f32.mrf.mxu0
        %v2181 = vadd.f32 0.0, %v2180
        %v2182 = vpop.f32.mrf.mxu0
        %v2183 = vpop.f32.mrf.mxu0
        %v2184 = vpop.f32.mrf.mxu0
        %2185 = vdwg.mxu0
        %v2186 = vsel %vm1728, %v1962, -inf
        %2187 = vmax.xlane.f32.xlu0 %v2186
        %v2188 = vpop.xlane.xlu0 %2187
        %v2189 = vmax.f32 %v2188, 1e-38
        %v2190 = vrcp.pop %v2189
        %v2191 = vmul.f32 %v1961, %v2190
        %2192 = vrot.lane.b32.xlu0 %v1958, 64
        %v2193 = vpop.permute.xlu0 %2192
        %2194 = vrot.lane.b32.xlu0 %v1959, 64
        %v2195 = vpop.permute.xlu0 %2194
        %v2197 = vsel %vm1501, %v2193, 0
        %v2200 = vsel %vm1501, %v2195, 0
        %2202 = vmatprep.subr.bf16.mxu0 0
        %2203 = vmatpush1.bf16.xpose.msra.mxu0 0
        %2204 = vmatprep.subr.bf16.mxu0 0
        %2205 = vmatpush1.bf16.xpose.msra.mxu0 0
        %2206 = vmatprep.subr.bf16.mxu0 0
        %2207 = vmatpush1.bf16.xpose.msra.mxu0 0
        %2208 = vmatprep.subr.bf16.mxu0 0
        %2209 = vmatpush1.bf16.xpose.msra.mxu0 0
        %2210 = vmatprep.subr.bf16.mxu0 0
        %2211 = vmatpush1.bf16.xpose.msra.mxu0 0
        %2212 = vmatprep.subr.bf16.mxu0 0
        %2213 = vmatpush1.bf16.xpose.msra.mxu0 0
        %2214 = vmatprep.subr.bf16.mxu0 0
        %2215 = vmatpush1.bf16.xpose.msra.mxu0 0
        %2216 = vmatprep.subr.bf16.mxu0 0
        %2217 = vmatpush1.bf16.xpose.msra.mxu0 %v2200
        %2218 = vmatprep.subr.bf16.mxu0 0
        %2219 = vmatpush2.bf16.xpose.msra.mxu0 0
        %2220 = vmatprep.subr.bf16.mxu0 0
        %2221 = vmatpush2.bf16.xpose.msra.mxu0 0
        %2222 = vmatprep.subr.bf16.mxu0 0
        %2223 = vmatpush2.bf16.xpose.msra.mxu0 0
        %2224 = vmatprep.subr.bf16.mxu0 0
        %2225 = vmatpush2.bf16.xpose.msra.mxu0 0
        %2226 = vmatprep.subr.bf16.mxu0 0
        %2227 = vmatpush2.bf16.xpose.msra.mxu0 0
        %2228 = vmatprep.subr.bf16.mxu0 0
        %2229 = vmatpush2.bf16.xpose.msra.mxu0 0
        %2230 = vmatprep.subr.bf16.mxu0 0
        %2231 = vmatpush2.bf16.xpose.msra.mxu0 0
        %2232 = vmatprep.subr.bf16.mxu0 0
        %2233 = vmatpush2.bf16.xpose.msra.mxu0 0
        %2234 = vmatprep.mubr.bf16.mxu0 0
        %2235 = vmatmul.mubr.bf16.gmra.mxu0 %v2197
        %v2236 = vpop.f32.mrf.mxu0
        %v2237 = vadd.f32 0.0, %v2236
        %v2238 = vpop.f32.mrf.mxu0
        %v2239 = vpop.f32.mrf.mxu0
        %v2240 = vpop.f32.mrf.mxu0
        %2241 = vdwg.mxu0
        %v2242 = vmul.f32 %v2237, %v2237
        %v2243 = vsel %vm1555, %v2242, 0.0
        %2244 = vadd.xlane.f32.xlu0 %v2243
        %v2245 = vpop.xlane.xlu0 %2244
        %v2246 = vmax.f32 %v2245, 1e-38
        %v2247 = vrcp.pop %v2246
        %v2248 = vmul.f32 %v2242, %v2247
        %v2249 = vpack.c.bf16 %v2248, %v2248
        %v2250 = vpack.c.bf16 %v2191, %v2191
        %2252 = vrot.lane.b32.xlu0 %v2250, 64
        %v2253 = vpop.permute.xlu0 %2252
        %v2255 = vsel %vm1555, %v2249, 0
        %v2258 = vsel %vm1567, %v2253, 0
        %2260 = vmatprep.subr.bf16.mxu0 0
        %2261 = vmatpush1.bf16.msra.mxu0 0
        %2262 = vmatprep.subr.bf16.mxu0 0
        %2263 = vmatpush1.bf16.msra.mxu0 0
        %2264 = vmatprep.subr.bf16.mxu0 0
        %2265 = vmatpush1.bf16.msra.mxu0 0
        %2266 = vmatprep.subr.bf16.mxu0 0
        %2267 = vmatpush1.bf16.msra.mxu0 0
        %2268 = vmatprep.subr.bf16.mxu0 0
        %2269 = vmatpush1.bf16.msra.mxu0 0
        %2270 = vmatprep.subr.bf16.mxu0 0
        %2271 = vmatpush1.bf16.msra.mxu0 0
        %2272 = vmatprep.subr.bf16.mxu0 0
        %2273 = vmatpush1.bf16.msra.mxu0 0
        %2274 = vmatprep.subr.bf16.mxu0 0
        %2275 = vmatpush1.bf16.msra.mxu0 %v2258
        %2276 = vmatprep.subr.bf16.mxu0 0
        %2277 = vmatpush2.bf16.msra.mxu0 0
        %2278 = vmatprep.subr.bf16.mxu0 0
        %2279 = vmatpush2.bf16.msra.mxu0 0
        %2280 = vmatprep.subr.bf16.mxu0 0
        %2281 = vmatpush2.bf16.msra.mxu0 0
        %2282 = vmatprep.subr.bf16.mxu0 0
        %2283 = vmatpush2.bf16.msra.mxu0 0
        %2284 = vmatprep.subr.bf16.mxu0 0
        %2285 = vmatpush2.bf16.msra.mxu0 0
        %2286 = vmatprep.subr.bf16.mxu0 0
        %2287 = vmatpush2.bf16.msra.mxu0 0
        %2288 = vmatprep.subr.bf16.mxu0 0
        %2289 = vmatpush2.bf16.msra.mxu0 0
        %2290 = vmatprep.subr.bf16.mxu0 0
        %2291 = vmatpush2.bf16.msra.mxu0 0
        %2292 = vmatprep.mubr.bf16.mxu0 0
        %2293 = vmatmul.mubr.bf16.gmra.mxu0 %v2255
        %v2294 = vpop.f32.mrf.mxu0
        %v2295 = vadd.f32 0.0, %v2294
        %v2296 = vpop.f32.mrf.mxu0
        %v2297 = vpop.f32.mrf.mxu0
        %v2298 = vpop.f32.mrf.mxu0
        %2299 = vdwg.mxu0
        %v2300 = vsel %vm1843, %v1962, -inf
        %2301 = vmax.xlane.f32.xlu0 %v2300
        %v2302 = vpop.xlane.xlu0 %2301
        %v2303 = vmax.f32 %v2302, 1e-38
        %v2304 = vrcp.pop %v2303
        %v2305 = vmul.f32 %v1961, %v2304
        %2306 = vrot.lane.b32.xlu0 %v1958, 32
        %v2307 = vpop.permute.xlu0 %2306
        %2308 = vrot.lane.b32.xlu0 %v1959, 32
        %v2309 = vpop.permute.xlu0 %2308
        %v2311 = vsel %vm1501, %v2307, 0
        %v2314 = vsel %vm1501, %v2309, 0
        %2316 = vmatprep.subr.bf16.mxu0 0
        %2317 = vmatpush1.bf16.xpose.msra.mxu0 0
        %2318 = vmatprep.subr.bf16.mxu0 0
        %2319 = vmatpush1.bf16.xpose.msra.mxu0 0
        %2320 = vmatprep.subr.bf16.mxu0 0
        %2321 = vmatpush1.bf16.xpose.msra.mxu0 0
        %2322 = vmatprep.subr.bf16.mxu0 0
        %2323 = vmatpush1.bf16.xpose.msra.mxu0 0
        %2324 = vmatprep.subr.bf16.mxu0 0
        %2325 = vmatpush1.bf16.xpose.msra.mxu0 0
        %2326 = vmatprep.subr.bf16.mxu0 0
        %2327 = vmatpush1.bf16.xpose.msra.mxu0 0
        %2328 = vmatprep.subr.bf16.mxu0 0
        %2329 = vmatpush1.bf16.xpose.msra.mxu0 0
        %2330 = vmatprep.subr.bf16.mxu0 0
        %2331 = vmatpush1.bf16.xpose.msra.mxu0 %v2314
        %2332 = vmatprep.subr.bf16.mxu0 0
        %2333 = vmatpush2.bf16.xpose.msra.mxu0 0
        %2334 = vmatprep.subr.bf16.mxu0 0
        %2335 = vmatpush2.bf16.xpose.msra.mxu0 0
        %2336 = vmatprep.subr.bf16.mxu0 0
        %2337 = vmatpush2.bf16.xpose.msra.mxu0 0
        %2338 = vmatprep.subr.bf16.mxu0 0
        %2339 = vmatpush2.bf16.xpose.msra.mxu0 0
        %2340 = vmatprep.subr.bf16.mxu0 0
        %2341 = vmatpush2.bf16.xpose.msra.mxu0 0
        %2342 = vmatprep.subr.bf16.mxu0 0
        %2343 = vmatpush2.bf16.xpose.msra.mxu0 0
        %2344 = vmatprep.subr.bf16.mxu0 0
        %2345 = vmatpush2.bf16.xpose.msra.mxu0 0
        %2346 = vmatprep.subr.bf16.mxu0 0
        %2347 = vmatpush2.bf16.xpose.msra.mxu0 0
        %2348 = vmatprep.mubr.bf16.mxu0 0
        %2349 = vmatmul.mubr.bf16.gmra.mxu0 %v2311
        %v2350 = vpop.f32.mrf.mxu0
        %v2351 = vadd.f32 0.0, %v2350
        %v2352 = vpop.f32.mrf.mxu0
        %v2353 = vpop.f32.mrf.mxu0
        %v2354 = vpop.f32.mrf.mxu0
        %2355 = vdwg.mxu0
        %v2356 = vmul.f32 %v2351, %v2351
        %v2357 = vsel %vm1555, %v2356, 0.0
        %2358 = vadd.xlane.f32.xlu0 %v2357
        %v2359 = vpop.xlane.xlu0 %2358
        %v2360 = vmax.f32 %v2359, 1e-38
        %v2361 = vrcp.pop %v2360
        %v2362 = vmul.f32 %v2356, %v2361
        %v2363 = vpack.c.bf16 %v2362, %v2362
        %v2364 = vpack.c.bf16 %v2305, %v2305
        %2366 = vrot.lane.b32.xlu0 %v2364, 32
        %v2367 = vpop.permute.xlu0 %2366
        %v2369 = vsel %vm1555, %v2363, 0
        %v2372 = vsel %vm1567, %v2367, 0
        %2374 = vmatprep.subr.bf16.mxu0 0
        %2375 = vmatpush1.bf16.msra.mxu0 0
        %2376 = vmatprep.subr.bf16.mxu0 0
        %2377 = vmatpush1.bf16.msra.mxu0 0
        %2378 = vmatprep.subr.bf16.mxu0 0
        %2379 = vmatpush1.bf16.msra.mxu0 0
        %2380 = vmatprep.subr.bf16.mxu0 0
        %2381 = vmatpush1.bf16.msra.mxu0 0
        %2382 = vmatprep.subr.bf16.mxu0 0
        %2383 = vmatpush1.bf16.msra.mxu0 0
        %2384 = vmatprep.subr.bf16.mxu0 0
        %2385 = vmatpush1.bf16.msra.mxu0 0
        %2386 = vmatprep.subr.bf16.mxu0 0
        %2387 = vmatpush1.bf16.msra.mxu0 0
        %2388 = vmatprep.subr.bf16.mxu0 0
        %2389 = vmatpush1.bf16.msra.mxu0 %v2372
        %2390 = vmatprep.subr.bf16.mxu0 0
        %2391 = vmatpush2.bf16.msra.mxu0 0
        %2392 = vmatprep.subr.bf16.mxu0 0
        %2393 = vmatpush2.bf16.msra.mxu0 0
        %2394 = vmatprep.subr.bf16.mxu0 0
        %2395 = vmatpush2.bf16.msra.mxu0 0
        %2396 = vmatprep.subr.bf16.mxu0 0
        %2397 = vmatpush2.bf16.msra.mxu0 0
        %2398 = vmatprep.subr.bf16.mxu0 0
        %2399 = vmatpush2.bf16.msra.mxu0 0
        %2400 = vmatprep.subr.bf16.mxu0 0
        %2401 = vmatpush2.bf16.msra.mxu0 0
        %2402 = vmatprep.subr.bf16.mxu0 0
        %2403 = vmatpush2.bf16.msra.mxu0 0
        %2404 = vmatprep.subr.bf16.mxu0 0
        %2405 = vmatpush2.bf16.msra.mxu0 0
        %2406 = vmatprep.mubr.bf16.mxu0 0
        %2407 = vmatmul.mubr.bf16.gmra.mxu0 %v2369
        %v2408 = vpop.f32.mrf.mxu0
        %v2409 = vadd.f32 0.0, %v2408
        %v2410 = vpop.f32.mrf.mxu0
        %v2411 = vpop.f32.mrf.mxu0
        %v2412 = vpop.f32.mrf.mxu0
        %2413 = vdwg.mxu0
        %2415 = vrot.lane.b32.xlu0 %v1723, 32
        %v2416 = vpop.permute.xlu0 %2415
        %2419 = vrot.lane.b32.xlu0 %v1838, 64
        %v2420 = vpop.permute.xlu0 %2419
        %2423 = vrot.lane.b32.xlu0 %v1953, 96
        %v2424 = vpop.permute.xlu0 %2423
        %2427 = vrot.lane.b32.xlu0 %v2181, 32
        %v2428 = vpop.permute.xlu0 %2427
        %2431 = vrot.lane.b32.xlu0 %v2295, 64
        %v2432 = vpop.permute.xlu0 %2431
        %2435 = vrot.lane.b32.xlu0 %v2409, 96
        %v2436 = vpop.permute.xlu0 %2435
        %v2438 = vsel %vm1501, %v1606, %v2416
        %vm2439 = vcmask 523264
        %v2440 = vsel %vm2439, %v2438, %v2420
        %vm2441 = vcmask 785408
        %v2442 = vsel %vm2441, %v2440, %v2424
        %v2443 = vsel %vm1501, %v2065, %v2428
        %v2444 = vsel %vm2439, %v2443, %v2432
        %v2445 = vsel %vm2441, %v2444, %v2436
        %v2446 = vadd.f32 %v257, %v2442
        %v2447 = vadd.f32 %v258, %v2445
        %2448 = vst [vmem:[%s255] sm:$0xff] %v2446
        %2449 = vst [vmem:[%s255 + $0x8] sm:$0xff] %v2447
        %s2450 = sand.u32 %s141, 1
        %s2451 = scalar_lea.sflag [#allocation4], %s2450
        %s2452 = sand.u32 %s141, 1
        %s2453 = smul.addr %s2452, 16
        %s2454 = scalar_lea.vmem [#allocation7], %s2453
        // Predicated region
        $region49: #{tpu_custom_call.1} parent=39 // pred_check
          %p2455 = pneg %p151
        $region50: #{tpu_custom_call.1} parent=39 // pred_check_branch
          %2457 = sbr.rel (%p2455) target = $region52
        $region51: #{tpu_custom_call.1} parent=39 // pred_region
          %s2459 = ssub.s32 256, 256
          %2460 = vsyncadd %s2451, %s2459
          %s2461 = smul.addr %s23, 2
          %s2462 = smul.addr %s2461, 128
          %s2463 = scalar_lea.hbm %s5, %s2462
          %s2465 = sshll.u32 %s2454, 4
          %s2466 = int_to_ptr.vmem [resolvable:$true] %s2465
          %2468 = dma.vmem_to_hbm [thread:$0]  %s2466, 256, %s2463, %s2451
        $region52: #{tpu_custom_call.1} parent=39 // pred_fallthru
          _
      $region40: #{tpu_custom_call.1} parent=5 // pred_fallthru
        _
      %p2469 = scmp.le.s32.totalorder 2, %s18
      // Predicated region
      $region53: #{tpu_custom_call.1} parent=5 // pred_check
        %p2470 = pneg %p2469
      $region54: #{tpu_custom_call.1} parent=5 // pred_check_branch
        %2472 = sbr.rel (%p2470) target = $region56
      $region55: #{tpu_custom_call.1} parent=5 // pred_region
        %s2473 = ssub.s32 %s18, 2
        // Predicated region
        $region57: #{tpu_custom_call.1} parent=55 // pred_check
          %p2474 = pneg %p157
        $region58: #{tpu_custom_call.1} parent=55 // pred_check_branch
          %2476 = sbr.rel (%p2474) target = $region60
        $region59: #{tpu_custom_call.1} parent=55 // pred_region
          %s2477 = sand.u32 %s142, 1
          %s2478 = scalar_lea.sflag [#allocation4], %s2477
          %s2479 = sand.u32 %s142, 1
          %s2480 = smul.addr %s2479, 16
          %s2481 = scalar_lea.vmem [#allocation7], %s2480
          %2482 = dma.done %s2478, 256
        $region60: #{tpu_custom_call.1} parent=55 // pred_fallthru
          _
      $region56: #{tpu_custom_call.1} parent=5 // pred_fallthru
        _
    $region6: #{tpu_custom_call.1} parent=1 // loop_footer
      %s22 = sadd.s32 1, %s18
    $region7: #{tpu_custom_call.1} parent=1 // loop_footer_branch
      %17 = sbr.rel target = $region3
    $region8: #{tpu_custom_call.1} parent=1 // loop_exit
      _
    %2483 = vsyncpa [#allocation3], 1
    %s2484 = scalar_lea.sflag [#allocation3], 1
    %2485 = vsyncpa %s2484, 1
    %2486 = vsyncpa [#allocation6], 1
    %2487 = vsyncpa [#allocation4], 1
    %s2488 = scalar_lea.sflag [#allocation4], 1
    %2489 = vsyncpa %s2488, 1

</llo_original>
